<compile_context>
chip_gen: v5e
topology: v5e:2x2
jax: 0.10.0
libtpu: 0.0.40
codegen_flags: <defaults>
</compile_context>

<pallas_src>
import functools

import jax
import jax.numpy as jnp
from jax.experimental import pallas as pl
from jax.experimental.pallas import tpu as pltpu


# Tap order t = kh*3 + kw (matches the fused-weight layout built in the wrapper).
_TAP_OFFSETS = tuple((kh - 1, kw - 1) for kh in range(3) for kw in range(3))


# ----------------------------- Pallas kernel ------------------------------- #

def _resnet_kernel(x_ref, w_ref, b_ref, m_ref, o_ref, tap_ref, *, W, n_conv, c_pad):
    """Chain of residual 3x3-conv blocks on one lane-packed activation slab.

    x_ref:   (C_pad, L)               channels on sublanes, batch*H*W on lanes.
    w_ref:   (n_conv, C_pad, 9*C_pad) fused weights, K index = tap*C_pad + cin.
    b_ref:   (n_conv, C_pad, 1)       biases (broadcast over lanes).
    m_ref:   (9*C_pad, L)             per-tap 0/1 border masks (VMEM resident).
    o_ref:   (C_pad, L)
    tap_ref: (9*C_pad, L)             VMEM scratch: stacked/masked tap operand.
    """
    L = x_ref.shape[1]

    def conv3x3(a, ci):
        # Build stacked-tap operand T[t*C_pad + cin, :] = masked shift of a.
        # Lane wrap / cross-image bleed from the roll only hits positions whose
        # mask is zero (|d| <= W+1 < HW), so "same" padding semantics hold.
        for t, (oh, ow) in enumerate(_TAP_OFFSETS):
            d = oh * W + ow
            rows = pl.ds(t * c_pad, c_pad)
            if d == 0:
                tap_ref[rows, :] = a                       # center tap: mask == 1
            else:
                tap_ref[rows, :] = (
                    pltpu.roll(a, shift=(-d) % L, axis=1) * m_ref[rows, :])
        # One fused MXU matmul per conv: (C_pad, 9*C_pad) x (9*C_pad, L).
        return jnp.dot(w_ref[ci], tap_ref[...],
                       preferred_element_type=jnp.float32) + b_ref[ci]

    a = x_ref[...]
    for blk in range(n_conv // 2):
        h = jnp.maximum(conv3x3(a, 2 * blk), 0.0)             # conv1 + ReLU
        a = jnp.maximum(conv3x3(h, 2 * blk + 1) + a, 0.0)     # conv2 + skip + ReLU
    o_ref[...] = a.astype(o_ref.dtype)


# ------------------------------ JAX wrapper --------------------------------- #

def resnet_forward(x, weights, biases, images_per_step=None):
    """Fused forward of a chain of ResBlocks.

    x: (N, C, H, W); weights: list of (C, C, 3, 3); biases: list of (C,),
    ordered [blk0.conv1, blk0.conv2, blk1.conv1, blk1.conv2, ...].
    """
    N, C, H, W = x.shape
    HW = H * W
    n_conv = len(weights)
    assert n_conv >= 2 and n_conv % 2 == 0

    c_pad = max(8, -(-C // 8) * 8)                 # f32 sublane granule

    if images_per_step is None:
        # Wide lane extent amortizes the ~0.35us per-step overhead; keep >= 2
        # grid steps when N >= 2 so both v7x TensorCores get a "parallel" step.
        images_per_step = max(1, 2048 // HW)
        if N >= 2:
            images_per_step = min(images_per_step, max(1, N // 2))
    nb = max(1, min(images_per_step, N))
    grid_n = -(-N // nb)
    n_pad = grid_n * nb
    L = nb * HW                                    # lanes per grid step

    # ---- activations: (N, C, H, W) -> (C_pad, N_pad*HW), zeros in all pads.
    x_p = jnp.zeros((n_pad, c_pad, HW), jnp.float32)
    x_p = x_p.at[:N, :C, :].set(x.reshape(N, C, HW).astype(jnp.float32))
    x_packed = x_p.transpose(1, 0, 2).reshape(c_pad, n_pad * HW)

    # ---- fused weights: W_fused[cout, t*C_pad + cin] = w[cout, cin, kh, kw].
    w_list = []
    for w in weights:
        wt = w.transpose(2, 3, 0, 1).reshape(9, C, C)          # (tap, cout, cin)
        wp = jnp.zeros((9, c_pad, c_pad), jnp.float32).at[:, :C, :C].set(wt)
        w_list.append(wp.transpose(1, 0, 2).reshape(c_pad, 9 * c_pad))
    w_all = jnp.stack(w_list, axis=0)                          # (n_conv, C_pad, 9*C_pad)

    b_all = jnp.zeros((n_conv, c_pad, 1), jnp.float32)
    b_all = b_all.at[:, :C, 0].set(jnp.stack(biases, axis=0))

    # ---- border masks (hoisted out of the kernel), per image-local position.
    pos = jnp.arange(L, dtype=jnp.int32) % HW
    hh = pos // W
    ww = pos % W
    rows = []
    for (oh, ow) in _TAP_OFFSETS:
        valid = ((hh + oh >= 0) & (hh + oh < H) &
                 (ww + ow >= 0) & (ww + ow < W)).astype(jnp.float32)
        rows.append(jnp.broadcast_to(valid[None, :], (c_pad, L)))
    masks = jnp.concatenate(rows, axis=0)                      # (9*C_pad, L)

    flops = 2 * n_conv * c_pad * (9 * c_pad) * n_pad * HW
    bytes_accessed = 4 * (2 * x_packed.size + w_all.size + b_all.size + masks.size)

    kern = functools.partial(_resnet_kernel, W=W, n_conv=n_conv, c_pad=c_pad)
    out = pl.pallas_call(
        kern,
        out_shape=jax.ShapeDtypeStruct((c_pad, n_pad * HW), jnp.float32),
        grid_spec=pltpu.PrefetchScalarGridSpec(
            num_scalar_prefetch=0,
            grid=(grid_n,),
            in_specs=[
                pl.BlockSpec((c_pad, L), lambda i: (0, i)),                     # activations
                pl.BlockSpec((n_conv, c_pad, 9 * c_pad), lambda i: (0, 0, 0)),  # fused weights
                pl.BlockSpec((n_conv, c_pad, 1), lambda i: (0, 0, 0)),          # biases
                pl.BlockSpec((9 * c_pad, L), lambda i: (0, 0)),                 # tap masks
            ],
            out_specs=pl.BlockSpec((c_pad, L), lambda i: (0, i)),
            scratch_shapes=[pltpu.VMEM((9 * c_pad, L), jnp.float32)],           # stacked taps
        ),
        compiler_params=pltpu.CompilerParams(
            dimension_semantics=("parallel",)),
        cost_estimate=pl.CostEstimate(
            flops=flops, transcendentals=0, bytes_accessed=bytes_accessed),
    )(x_packed, w_all, b_all, masks)

    out = out.reshape(c_pad, n_pad, HW).transpose(1, 0, 2)[:N, :C]
    return out.reshape(N, C, H, W)


# ------------------------------- Modules ------------------------------------ #

class ResBlock:
    """conv3x3 -> ReLU -> conv3x3 -> +skip -> ReLU (channels preserved)."""

    def __init__(self, key, channels):
        k1, k2 = jax.random.split(key)
        std = 1.0 / float(jnp.sqrt(channels * 9))
        self.channels = channels
        self.w1 = jax.random.uniform(k1, (channels, channels, 3, 3),
                                     jnp.float32, -std, std)
        self.b1 = jnp.zeros((channels,), jnp.float32)
        self.w2 = jax.random.uniform(k2, (channels, channels, 3, 3),
                                     jnp.float32, -std, std)
        self.b2 = jnp.zeros((channels,), jnp.float32)


class ResNet:
    """Mirrors arch_blocks.ResNet: filters None blocks, applies them in order.

    All retained blocks are fused into a single Pallas kernel invocation.
    """

    def __init__(self, *blocks):
        self.blocks = [blk for blk in blocks if blk is not None]

    def __call__(self, x):
        if not self.blocks:
            return x
        channels = self.blocks[0].channels
        weights, biases = [], []
        for blk in self.blocks:
            assert blk.channels == channels
            weights += [blk.w1, blk.w2]
            biases += [blk.b1, blk.b2]
        return resnet_forward(x, weights, biases)


# --------------------------- plain-JAX reference ---------------------------- #

def _ref_conv3x3(x, w, b):
    out = jax.lax.conv_general_dilated(
        x, w, window_strides=(1, 1), padding=((1, 1), (1, 1)),
        dimension_numbers=("NCHW", "OIHW", "NCHW"))
    return out + b[None, :, None, None]


def _ref_resblock(x, blk):
    h = jnp.maximum(_ref_conv3x3(x, blk.w1, blk.b1), 0.0)
    return jnp.maximum(_ref_conv3x3(h, blk.w2, blk.b2) + x, 0.0)


# ---------------------------------- main ------------------------------------ #

if __name__ == "__main__":
    key = jax.random.PRNGKey(0)
    kx, kb1, kb2 = jax.random.split(key, 3)

    x = jax.random.normal(kx, (2, 4, 16, 16), jnp.float32)  # NCHW

    blk1 = ResBlock(kb1, 4)
    blk2 = ResBlock(kb2, 4)
    # `None` block is filtered out, exactly like the torch module's __init__.
    net = ResNet(blk1, None, blk2)

    y = jax.block_until_ready(net(x))

    ref = _ref_resblock(_ref_resblock(x, blk1), blk2)
    assert y.shape == ref.shape == (2, 4, 16, 16)
    assert jnp.allclose(y, ref, atol=2e-4, rtol=2e-4)
    print("KERNEL_OK")
</pallas_src>

<mosaic_0001>
module attributes {stable_mosaic.version = 11 : i64} {
  func.func @_resnet_kernel(%arg0: i32, %arg1: memref<8x256xf32, #tpu.memory_space<vmem>>, %arg2: memref<4x8x72xf32, #tpu.memory_space<vmem>>, %arg3: memref<4x8x1xf32, #tpu.memory_space<vmem>>, %arg4: memref<72x256xf32, #tpu.memory_space<vmem>>, %arg5: memref<8x256xf32, #tpu.memory_space<vmem>>, %arg6: memref<72x256xf32, #tpu.memory_space<vmem>>) attributes {dimension_semantics = [#tpu.dimension_semantics<parallel>], iteration_bounds = array<i64: 2>, scalar_prefetch = 0 : i64, scratch_operands = 1 : i64, tpu.core_type = #tpu.core_type<tc>, window_params = [{transform_indices = @transform_0, window_bounds = array<i64: 8, 256>}, {pipeline_mode = #tpu.pipeline_mode<synchronous>, transform_indices = @transform_1, window_bounds = array<i64: 4, 8, 72>}, {pipeline_mode = #tpu.pipeline_mode<synchronous>, transform_indices = @transform_2, window_bounds = array<i64: 4, 8, 1>}, {pipeline_mode = #tpu.pipeline_mode<synchronous>, transform_indices = @transform_3, window_bounds = array<i64: 72, 256>}, {transform_indices = @transform_4, window_bounds = array<i64: 8, 256>}]} {
    %c0 = arith.constant 0 : index
    %c0_0 = arith.constant 0 : index
    %0 = vector.load %arg1[%c0, %c0_0] : memref<8x256xf32, #tpu.memory_space<vmem>>, vector<8x256xf32>
    %c17_i32 = arith.constant 17 : i32
    %1 = tpu.dynamic_rotate %0 by %c17_i32 dim 1 : vector<8x256xf32>, i32 -> vector<8x256xf32>
    %c0_1 = arith.constant 0 : index
    %c0_2 = arith.constant 0 : index
    %2 = vector.load %arg4[%c0_1, %c0_2] : memref<72x256xf32, #tpu.memory_space<vmem>>, vector<8x256xf32>
    %3 = arith.mulf %1, %2 : vector<8x256xf32>
    %c0_3 = arith.constant 0 : index
    %c0_4 = arith.constant 0 : index
    %4 = vector.load %arg6[%c0_3, %c0_4] : memref<72x256xf32, #tpu.memory_space<vmem>>, vector<8x256xf32>
    tpu.vector_store %arg6[%c0_3, %c0_4], %3 {strides = array<i32>} : memref<72x256xf32, #tpu.memory_space<vmem>>, vector<8x256xf32>,
    %c16_i32 = arith.constant 16 : i32
    %5 = tpu.dynamic_rotate %0 by %c16_i32 dim 1 : vector<8x256xf32>, i32 -> vector<8x256xf32>
    %c8 = arith.constant 8 : index
    %c0_5 = arith.constant 0 : index
    %6 = vector.load %arg4[%c8, %c0_5] : memref<72x256xf32, #tpu.memory_space<vmem>>, vector<8x256xf32>
    %7 = arith.mulf %5, %6 : vector<8x256xf32>
    %c8_6 = arith.constant 8 : index
    %c0_7 = arith.constant 0 : index
    %8 = vector.load %arg6[%c8_6, %c0_7] : memref<72x256xf32, #tpu.memory_space<vmem>>, vector<8x256xf32>
    tpu.vector_store %arg6[%c8_6, %c0_7], %7 {strides = array<i32>} : memref<72x256xf32, #tpu.memory_space<vmem>>, vector<8x256xf32>,
    %c15_i32 = arith.constant 15 : i32
    %9 = tpu.dynamic_rotate %0 by %c15_i32 dim 1 : vector<8x256xf32>, i32 -> vector<8x256xf32>
    %c16 = arith.constant 16 : index
    %c0_8 = arith.constant 0 : index
    %10 = vector.load %arg4[%c16, %c0_8] : memref<72x256xf32, #tpu.memory_space<vmem>>, vector<8x256xf32>
    %11 = arith.mulf %9, %10 : vector<8x256xf32>
    %c16_9 = arith.constant 16 : index
    %c0_10 = arith.constant 0 : index
    %12 = vector.load %arg6[%c16_9, %c0_10] : memref<72x256xf32, #tpu.memory_space<vmem>>, vector<8x256xf32>
    tpu.vector_store %arg6[%c16_9, %c0_10], %11 {strides = array<i32>} : memref<72x256xf32, #tpu.memory_space<vmem>>, vector<8x256xf32>,
    %c1_i32 = arith.constant 1 : i32
    %13 = tpu.dynamic_rotate %0 by %c1_i32 dim 1 : vector<8x256xf32>, i32 -> vector<8x256xf32>
    %c24 = arith.constant 24 : index
    %c0_11 = arith.constant 0 : index
    %14 = vector.load %arg4[%c24, %c0_11] : memref<72x256xf32, #tpu.memory_space<vmem>>, vector<8x256xf32>
    %15 = arith.mulf %13, %14 : vector<8x256xf32>
    %c24_12 = arith.constant 24 : index
    %c0_13 = arith.constant 0 : index
    %16 = vector.load %arg6[%c24_12, %c0_13] : memref<72x256xf32, #tpu.memory_space<vmem>>, vector<8x256xf32>
    tpu.vector_store %arg6[%c24_12, %c0_13], %15 {strides = array<i32>} : memref<72x256xf32, #tpu.memory_space<vmem>>, vector<8x256xf32>,
    %c32 = arith.constant 32 : index
    %c0_14 = arith.constant 0 : index
    %17 = vector.load %arg6[%c32, %c0_14] : memref<72x256xf32, #tpu.memory_space<vmem>>, vector<8x256xf32>
    tpu.vector_store %arg6[%c32, %c0_14], %0 {strides = array<i32>} : memref<72x256xf32, #tpu.memory_space<vmem>>, vector<8x256xf32>,
    %c255_i32 = arith.constant 255 : i32
    %18 = tpu.dynamic_rotate %0 by %c255_i32 dim 1 : vector<8x256xf32>, i32 -> vector<8x256xf32>
    %c40 = arith.constant 40 : index
    %c0_15 = arith.constant 0 : index
    %19 = vector.load %arg4[%c40, %c0_15] : memref<72x256xf32, #tpu.memory_space<vmem>>, vector<8x256xf32>
    %20 = arith.mulf %18, %19 : vector<8x256xf32>
    %c40_16 = arith.constant 40 : index
    %c0_17 = arith.constant 0 : index
    %21 = vector.load %arg6[%c40_16, %c0_17] : memref<72x256xf32, #tpu.memory_space<vmem>>, vector<8x256xf32>
    tpu.vector_store %arg6[%c40_16, %c0_17], %20 {strides = array<i32>} : memref<72x256xf32, #tpu.memory_space<vmem>>, vector<8x256xf32>,
    %c241_i32 = arith.constant 241 : i32
    %22 = tpu.dynamic_rotate %0 by %c241_i32 dim 1 : vector<8x256xf32>, i32 -> vector<8x256xf32>
    %c48 = arith.constant 48 : index
    %c0_18 = arith.constant 0 : index
    %23 = vector.load %arg4[%c48, %c0_18] : memref<72x256xf32, #tpu.memory_space<vmem>>, vector<8x256xf32>
    %24 = arith.mulf %22, %23 : vector<8x256xf32>
    %c48_19 = arith.constant 48 : index
    %c0_20 = arith.constant 0 : index
    %25 = vector.load %arg6[%c48_19, %c0_20] : memref<72x256xf32, #tpu.memory_space<vmem>>, vector<8x256xf32>
    tpu.vector_store %arg6[%c48_19, %c0_20], %24 {strides = array<i32>} : memref<72x256xf32, #tpu.memory_space<vmem>>, vector<8x256xf32>,
    %c240_i32 = arith.constant 240 : i32
    %26 = tpu.dynamic_rotate %0 by %c240_i32 dim 1 : vector<8x256xf32>, i32 -> vector<8x256xf32>
    %c56 = arith.constant 56 : index
    %c0_21 = arith.constant 0 : index
    %27 = vector.load %arg4[%c56, %c0_21] : memref<72x256xf32, #tpu.memory_space<vmem>>, vector<8x256xf32>
    %28 = arith.mulf %26, %27 : vector<8x256xf32>
    %c56_22 = arith.constant 56 : index
    %c0_23 = arith.constant 0 : index
    %29 = vector.load %arg6[%c56_22, %c0_23] : memref<72x256xf32, #tpu.memory_space<vmem>>, vector<8x256xf32>
    tpu.vector_store %arg6[%c56_22, %c0_23], %28 {strides = array<i32>} : memref<72x256xf32, #tpu.memory_space<vmem>>, vector<8x256xf32>,
    %c239_i32 = arith.constant 239 : i32
    %30 = tpu.dynamic_rotate %0 by %c239_i32 dim 1 : vector<8x256xf32>, i32 -> vector<8x256xf32>
    %c64 = arith.constant 64 : index
    %c0_24 = arith.constant 0 : index
    %31 = vector.load %arg4[%c64, %c0_24] : memref<72x256xf32, #tpu.memory_space<vmem>>, vector<8x256xf32>
    %32 = arith.mulf %30, %31 : vector<8x256xf32>
    %c64_25 = arith.constant 64 : index
    %c0_26 = arith.constant 0 : index
    %33 = vector.load %arg6[%c64_25, %c0_26] : memref<72x256xf32, #tpu.memory_space<vmem>>, vector<8x256xf32>
    tpu.vector_store %arg6[%c64_25, %c0_26], %32 {strides = array<i32>} : memref<72x256xf32, #tpu.memory_space<vmem>>, vector<8x256xf32>,
    %c0_27 = arith.constant 0 : index
    %c0_28 = arith.constant 0 : index
    %c0_29 = arith.constant 0 : index
    %34 = vector.load %arg2[%c0_27, %c0_28, %c0_29] : memref<4x8x72xf32, #tpu.memory_space<vmem>>, vector<1x8x72xf32>
    %35 = vector.shape_cast %34 : vector<1x8x72xf32> to vector<8x72xf32>
    %c0_30 = arith.constant 0 : index
    %c0_31 = arith.constant 0 : index
    %36 = vector.load %arg6[%c0_30, %c0_31] : memref<72x256xf32, #tpu.memory_space<vmem>>, vector<72x256xf32>
    %cst = arith.constant dense<0.000000e+00> : vector<8x256xf32>
    %37 = tpu.matmul %35, %36, %cst {dimension_numbers = #tpu.dot_dimension_numbers<[1], [0], [0], [1], [0, 0, 1, 1], [], []>} : vector<8x72xf32>, vector<72x256xf32>, vector<8x256xf32> -> vector<8x256xf32>
    %c0_32 = arith.constant 0 : index
    %c0_33 = arith.constant 0 : index
    %c0_34 = arith.constant 0 : index
    %38 = vector.load %arg3[%c0_32, %c0_33, %c0_34] : memref<4x8x1xf32, #tpu.memory_space<vmem>>, vector<1x8x1xf32>
    %39 = vector.shape_cast %38 : vector<1x8x1xf32> to vector<8x1xf32>
    %40 = vector.broadcast %39 : vector<8x1xf32> to vector<8x256xf32>
    %41 = arith.addf %37, %40 : vector<8x256xf32>
    %cst_35 = arith.constant 0.000000e+00 : f32
    %42 = vector.broadcast %cst_35 : f32 to vector<8x256xf32>
    %43 = arith.maximumf %41, %42 : vector<8x256xf32>
    %c17_i32_36 = arith.constant 17 : i32
    %44 = tpu.dynamic_rotate %43 by %c17_i32_36 dim 1 : vector<8x256xf32>, i32 -> vector<8x256xf32>
    %c0_37 = arith.constant 0 : index
    %c0_38 = arith.constant 0 : index
    %45 = vector.load %arg4[%c0_37, %c0_38] : memref<72x256xf32, #tpu.memory_space<vmem>>, vector<8x256xf32>
    %46 = arith.mulf %44, %45 : vector<8x256xf32>
    %c0_39 = arith.constant 0 : index
    %c0_40 = arith.constant 0 : index
    %47 = vector.load %arg6[%c0_39, %c0_40] : memref<72x256xf32, #tpu.memory_space<vmem>>, vector<8x256xf32>
    tpu.vector_store %arg6[%c0_39, %c0_40], %46 {strides = array<i32>} : memref<72x256xf32, #tpu.memory_space<vmem>>, vector<8x256xf32>,
    %c16_i32_41 = arith.constant 16 : i32
    %48 = tpu.dynamic_rotate %43 by %c16_i32_41 dim 1 : vector<8x256xf32>, i32 -> vector<8x256xf32>
    %c8_42 = arith.constant 8 : index
    %c0_43 = arith.constant 0 : index
    %49 = vector.load %arg4[%c8_42, %c0_43] : memref<72x256xf32, #tpu.memory_space<vmem>>, vector<8x256xf32>
    %50 = arith.mulf %48, %49 : vector<8x256xf32>
    %c8_44 = arith.constant 8 : index
    %c0_45 = arith.constant 0 : index
    %51 = vector.load %arg6[%c8_44, %c0_45] : memref<72x256xf32, #tpu.memory_space<vmem>>, vector<8x256xf32>
    tpu.vector_store %arg6[%c8_44, %c0_45], %50 {strides = array<i32>} : memref<72x256xf32, #tpu.memory_space<vmem>>, vector<8x256xf32>,
    %c15_i32_46 = arith.constant 15 : i32
    %52 = tpu.dynamic_rotate %43 by %c15_i32_46 dim 1 : vector<8x256xf32>, i32 -> vector<8x256xf32>
    %c16_47 = arith.constant 16 : index
    %c0_48 = arith.constant 0 : index
    %53 = vector.load %arg4[%c16_47, %c0_48] : memref<72x256xf32, #tpu.memory_space<vmem>>, vector<8x256xf32>
    %54 = arith.mulf %52, %53 : vector<8x256xf32>
    %c16_49 = arith.constant 16 : index
    %c0_50 = arith.constant 0 : index
    %55 = vector.load %arg6[%c16_49, %c0_50] : memref<72x256xf32, #tpu.memory_space<vmem>>, vector<8x256xf32>
    tpu.vector_store %arg6[%c16_49, %c0_50], %54 {strides = array<i32>} : memref<72x256xf32, #tpu.memory_space<vmem>>, vector<8x256xf32>,
    %c1_i32_51 = arith.constant 1 : i32
    %56 = tpu.dynamic_rotate %43 by %c1_i32_51 dim 1 : vector<8x256xf32>, i32 -> vector<8x256xf32>
    %c24_52 = arith.constant 24 : index
    %c0_53 = arith.constant 0 : index
    %57 = vector.load %arg4[%c24_52, %c0_53] : memref<72x256xf32, #tpu.memory_space<vmem>>, vector<8x256xf32>
    %58 = arith.mulf %56, %57 : vector<8x256xf32>
    %c24_54 = arith.constant 24 : index
    %c0_55 = arith.constant 0 : index
    %59 = vector.load %arg6[%c24_54, %c0_55] : memref<72x256xf32, #tpu.memory_space<vmem>>, vector<8x256xf32>
    tpu.vector_store %arg6[%c24_54, %c0_55], %58 {strides = array<i32>} : memref<72x256xf32, #tpu.memory_space<vmem>>, vector<8x256xf32>,
    %c32_56 = arith.constant 32 : index
    %c0_57 = arith.constant 0 : index
    %60 = vector.load %arg6[%c32_56, %c0_57] : memref<72x256xf32, #tpu.memory_space<vmem>>, vector<8x256xf32>
    tpu.vector_store %arg6[%c32_56, %c0_57], %43 {strides = array<i32>} : memref<72x256xf32, #tpu.memory_space<vmem>>, vector<8x256xf32>,
    %c255_i32_58 = arith.constant 255 : i32
    %61 = tpu.dynamic_rotate %43 by %c255_i32_58 dim 1 : vector<8x256xf32>, i32 -> vector<8x256xf32>
    %c40_59 = arith.constant 40 : index
    %c0_60 = arith.constant 0 : index
    %62 = vector.load %arg4[%c40_59, %c0_60] : memref<72x256xf32, #tpu.memory_space<vmem>>, vector<8x256xf32>
    %63 = arith.mulf %61, %62 : vector<8x256xf32>
    %c40_61 = arith.constant 40 : index
    %c0_62 = arith.constant 0 : index
    %64 = vector.load %arg6[%c40_61, %c0_62] : memref<72x256xf32, #tpu.memory_space<vmem>>, vector<8x256xf32>
    tpu.vector_store %arg6[%c40_61, %c0_62], %63 {strides = array<i32>} : memref<72x256xf32, #tpu.memory_space<vmem>>, vector<8x256xf32>,
    %c241_i32_63 = arith.constant 241 : i32
    %65 = tpu.dynamic_rotate %43 by %c241_i32_63 dim 1 : vector<8x256xf32>, i32 -> vector<8x256xf32>
    %c48_64 = arith.constant 48 : index
    %c0_65 = arith.constant 0 : index
    %66 = vector.load %arg4[%c48_64, %c0_65] : memref<72x256xf32, #tpu.memory_space<vmem>>, vector<8x256xf32>
    %67 = arith.mulf %65, %66 : vector<8x256xf32>
    %c48_66 = arith.constant 48 : index
    %c0_67 = arith.constant 0 : index
    %68 = vector.load %arg6[%c48_66, %c0_67] : memref<72x256xf32, #tpu.memory_space<vmem>>, vector<8x256xf32>
    tpu.vector_store %arg6[%c48_66, %c0_67], %67 {strides = array<i32>} : memref<72x256xf32, #tpu.memory_space<vmem>>, vector<8x256xf32>,
    %c240_i32_68 = arith.constant 240 : i32
    %69 = tpu.dynamic_rotate %43 by %c240_i32_68 dim 1 : vector<8x256xf32>, i32 -> vector<8x256xf32>
    %c56_69 = arith.constant 56 : index
    %c0_70 = arith.constant 0 : index
    %70 = vector.load %arg4[%c56_69, %c0_70] : memref<72x256xf32, #tpu.memory_space<vmem>>, vector<8x256xf32>
    %71 = arith.mulf %69, %70 : vector<8x256xf32>
    %c56_71 = arith.constant 56 : index
    %c0_72 = arith.constant 0 : index
    %72 = vector.load %arg6[%c56_71, %c0_72] : memref<72x256xf32, #tpu.memory_space<vmem>>, vector<8x256xf32>
    tpu.vector_store %arg6[%c56_71, %c0_72], %71 {strides = array<i32>} : memref<72x256xf32, #tpu.memory_space<vmem>>, vector<8x256xf32>,
    %c239_i32_73 = arith.constant 239 : i32
    %73 = tpu.dynamic_rotate %43 by %c239_i32_73 dim 1 : vector<8x256xf32>, i32 -> vector<8x256xf32>
    %c64_74 = arith.constant 64 : index
    %c0_75 = arith.constant 0 : index
    %74 = vector.load %arg4[%c64_74, %c0_75] : memref<72x256xf32, #tpu.memory_space<vmem>>, vector<8x256xf32>
    %75 = arith.mulf %73, %74 : vector<8x256xf32>
    %c64_76 = arith.constant 64 : index
    %c0_77 = arith.constant 0 : index
    %76 = vector.load %arg6[%c64_76, %c0_77] : memref<72x256xf32, #tpu.memory_space<vmem>>, vector<8x256xf32>
    tpu.vector_store %arg6[%c64_76, %c0_77], %75 {strides = array<i32>} : memref<72x256xf32, #tpu.memory_space<vmem>>, vector<8x256xf32>,
    %c1 = arith.constant 1 : index
    %c0_78 = arith.constant 0 : index
    %c0_79 = arith.constant 0 : index
    %77 = vector.load %arg2[%c1, %c0_78, %c0_79] : memref<4x8x72xf32, #tpu.memory_space<vmem>>, vector<1x8x72xf32>
    %78 = vector.shape_cast %77 : vector<1x8x72xf32> to vector<8x72xf32>
    %c0_80 = arith.constant 0 : index
    %c0_81 = arith.constant 0 : index
    %79 = vector.load %arg6[%c0_80, %c0_81] : memref<72x256xf32, #tpu.memory_space<vmem>>, vector<72x256xf32>
    %cst_82 = arith.constant dense<0.000000e+00> : vector<8x256xf32>
    %80 = tpu.matmul %78, %79, %cst_82 {dimension_numbers = #tpu.dot_dimension_numbers<[1], [0], [0], [1], [0, 0, 1, 1], [], []>} : vector<8x72xf32>, vector<72x256xf32>, vector<8x256xf32> -> vector<8x256xf32>
    %c1_83 = arith.constant 1 : index
    %c0_84 = arith.constant 0 : index
    %c0_85 = arith.constant 0 : index
    %81 = vector.load %arg3[%c1_83, %c0_84, %c0_85] : memref<4x8x1xf32, #tpu.memory_space<vmem>>, vector<1x8x1xf32>
    %82 = vector.shape_cast %81 : vector<1x8x1xf32> to vector<8x1xf32>
    %83 = vector.broadcast %82 : vector<8x1xf32> to vector<8x256xf32>
    %84 = arith.addf %80, %83 : vector<8x256xf32>
    %85 = arith.addf %84, %0 : vector<8x256xf32>
    %cst_86 = arith.constant 0.000000e+00 : f32
    %86 = vector.broadcast %cst_86 : f32 to vector<8x256xf32>
    %87 = arith.maximumf %85, %86 : vector<8x256xf32>
    %c17_i32_87 = arith.constant 17 : i32
    %88 = tpu.dynamic_rotate %87 by %c17_i32_87 dim 1 : vector<8x256xf32>, i32 -> vector<8x256xf32>
    %c0_88 = arith.constant 0 : index
    %c0_89 = arith.constant 0 : index
    %89 = vector.load %arg4[%c0_88, %c0_89] : memref<72x256xf32, #tpu.memory_space<vmem>>, vector<8x256xf32>
    %90 = arith.mulf %88, %89 : vector<8x256xf32>
    %c0_90 = arith.constant 0 : index
    %c0_91 = arith.constant 0 : index
    %91 = vector.load %arg6[%c0_90, %c0_91] : memref<72x256xf32, #tpu.memory_space<vmem>>, vector<8x256xf32>
    tpu.vector_store %arg6[%c0_90, %c0_91], %90 {strides = array<i32>} : memref<72x256xf32, #tpu.memory_space<vmem>>, vector<8x256xf32>,
    %c16_i32_92 = arith.constant 16 : i32
    %92 = tpu.dynamic_rotate %87 by %c16_i32_92 dim 1 : vector<8x256xf32>, i32 -> vector<8x256xf32>
    %c8_93 = arith.constant 8 : index
    %c0_94 = arith.constant 0 : index
    %93 = vector.load %arg4[%c8_93, %c0_94] : memref<72x256xf32, #tpu.memory_space<vmem>>, vector<8x256xf32>
    %94 = arith.mulf %92, %93 : vector<8x256xf32>
    %c8_95 = arith.constant 8 : index
    %c0_96 = arith.constant 0 : index
    %95 = vector.load %arg6[%c8_95, %c0_96] : memref<72x256xf32, #tpu.memory_space<vmem>>, vector<8x256xf32>
    tpu.vector_store %arg6[%c8_95, %c0_96], %94 {strides = array<i32>} : memref<72x256xf32, #tpu.memory_space<vmem>>, vector<8x256xf32>,
    %c15_i32_97 = arith.constant 15 : i32
    %96 = tpu.dynamic_rotate %87 by %c15_i32_97 dim 1 : vector<8x256xf32>, i32 -> vector<8x256xf32>
    %c16_98 = arith.constant 16 : index
    %c0_99 = arith.constant 0 : index
    %97 = vector.load %arg4[%c16_98, %c0_99] : memref<72x256xf32, #tpu.memory_space<vmem>>, vector<8x256xf32>
    %98 = arith.mulf %96, %97 : vector<8x256xf32>
    %c16_100 = arith.constant 16 : index
    %c0_101 = arith.constant 0 : index
    %99 = vector.load %arg6[%c16_100, %c0_101] : memref<72x256xf32, #tpu.memory_space<vmem>>, vector<8x256xf32>
    tpu.vector_store %arg6[%c16_100, %c0_101], %98 {strides = array<i32>} : memref<72x256xf32, #tpu.memory_space<vmem>>, vector<8x256xf32>,
    %c1_i32_102 = arith.constant 1 : i32
    %100 = tpu.dynamic_rotate %87 by %c1_i32_102 dim 1 : vector<8x256xf32>, i32 -> vector<8x256xf32>
    %c24_103 = arith.constant 24 : index
    %c0_104 = arith.constant 0 : index
    %101 = vector.load %arg4[%c24_103, %c0_104] : memref<72x256xf32, #tpu.memory_space<vmem>>, vector<8x256xf32>
    %102 = arith.mulf %100, %101 : vector<8x256xf32>
    %c24_105 = arith.constant 24 : index
    %c0_106 = arith.constant 0 : index
    %103 = vector.load %arg6[%c24_105, %c0_106] : memref<72x256xf32, #tpu.memory_space<vmem>>, vector<8x256xf32>
    tpu.vector_store %arg6[%c24_105, %c0_106], %102 {strides = array<i32>} : memref<72x256xf32, #tpu.memory_space<vmem>>, vector<8x256xf32>,
    %c32_107 = arith.constant 32 : index
    %c0_108 = arith.constant 0 : index
    %104 = vector.load %arg6[%c32_107, %c0_108] : memref<72x256xf32, #tpu.memory_space<vmem>>, vector<8x256xf32>
    tpu.vector_store %arg6[%c32_107, %c0_108], %87 {strides = array<i32>} : memref<72x256xf32, #tpu.memory_space<vmem>>, vector<8x256xf32>,
    %c255_i32_109 = arith.constant 255 : i32
    %105 = tpu.dynamic_rotate %87 by %c255_i32_109 dim 1 : vector<8x256xf32>, i32 -> vector<8x256xf32>
    %c40_110 = arith.constant 40 : index
    %c0_111 = arith.constant 0 : index
    %106 = vector.load %arg4[%c40_110, %c0_111] : memref<72x256xf32, #tpu.memory_space<vmem>>, vector<8x256xf32>
    %107 = arith.mulf %105, %106 : vector<8x256xf32>
    %c40_112 = arith.constant 40 : index
    %c0_113 = arith.constant 0 : index
    %108 = vector.load %arg6[%c40_112, %c0_113] : memref<72x256xf32, #tpu.memory_space<vmem>>, vector<8x256xf32>
    tpu.vector_store %arg6[%c40_112, %c0_113], %107 {strides = array<i32>} : memref<72x256xf32, #tpu.memory_space<vmem>>, vector<8x256xf32>,
    %c241_i32_114 = arith.constant 241 : i32
    %109 = tpu.dynamic_rotate %87 by %c241_i32_114 dim 1 : vector<8x256xf32>, i32 -> vector<8x256xf32>
    %c48_115 = arith.constant 48 : index
    %c0_116 = arith.constant 0 : index
    %110 = vector.load %arg4[%c48_115, %c0_116] : memref<72x256xf32, #tpu.memory_space<vmem>>, vector<8x256xf32>
    %111 = arith.mulf %109, %110 : vector<8x256xf32>
    %c48_117 = arith.constant 48 : index
    %c0_118 = arith.constant 0 : index
    %112 = vector.load %arg6[%c48_117, %c0_118] : memref<72x256xf32, #tpu.memory_space<vmem>>, vector<8x256xf32>
    tpu.vector_store %arg6[%c48_117, %c0_118], %111 {strides = array<i32>} : memref<72x256xf32, #tpu.memory_space<vmem>>, vector<8x256xf32>,
    %c240_i32_119 = arith.constant 240 : i32
    %113 = tpu.dynamic_rotate %87 by %c240_i32_119 dim 1 : vector<8x256xf32>, i32 -> vector<8x256xf32>
    %c56_120 = arith.constant 56 : index
    %c0_121 = arith.constant 0 : index
    %114 = vector.load %arg4[%c56_120, %c0_121] : memref<72x256xf32, #tpu.memory_space<vmem>>, vector<8x256xf32>
    %115 = arith.mulf %113, %114 : vector<8x256xf32>
    %c56_122 = arith.constant 56 : index
    %c0_123 = arith.constant 0 : index
    %116 = vector.load %arg6[%c56_122, %c0_123] : memref<72x256xf32, #tpu.memory_space<vmem>>, vector<8x256xf32>
    tpu.vector_store %arg6[%c56_122, %c0_123], %115 {strides = array<i32>} : memref<72x256xf32, #tpu.memory_space<vmem>>, vector<8x256xf32>,
    %c239_i32_124 = arith.constant 239 : i32
    %117 = tpu.dynamic_rotate %87 by %c239_i32_124 dim 1 : vector<8x256xf32>, i32 -> vector<8x256xf32>
    %c64_125 = arith.constant 64 : index
    %c0_126 = arith.constant 0 : index
    %118 = vector.load %arg4[%c64_125, %c0_126] : memref<72x256xf32, #tpu.memory_space<vmem>>, vector<8x256xf32>
    %119 = arith.mulf %117, %118 : vector<8x256xf32>
    %c64_127 = arith.constant 64 : index
    %c0_128 = arith.constant 0 : index
    %120 = vector.load %arg6[%c64_127, %c0_128] : memref<72x256xf32, #tpu.memory_space<vmem>>, vector<8x256xf32>
    tpu.vector_store %arg6[%c64_127, %c0_128], %119 {strides = array<i32>} : memref<72x256xf32, #tpu.memory_space<vmem>>, vector<8x256xf32>,
    %c2 = arith.constant 2 : index
    %c0_129 = arith.constant 0 : index
    %c0_130 = arith.constant 0 : index
    %121 = vector.load %arg2[%c2, %c0_129, %c0_130] : memref<4x8x72xf32, #tpu.memory_space<vmem>>, vector<1x8x72xf32>
    %122 = vector.shape_cast %121 : vector<1x8x72xf32> to vector<8x72xf32>
    %c0_131 = arith.constant 0 : index
    %c0_132 = arith.constant 0 : index
    %123 = vector.load %arg6[%c0_131, %c0_132] : memref<72x256xf32, #tpu.memory_space<vmem>>, vector<72x256xf32>
    %cst_133 = arith.constant dense<0.000000e+00> : vector<8x256xf32>
    %124 = tpu.matmul %122, %123, %cst_133 {dimension_numbers = #tpu.dot_dimension_numbers<[1], [0], [0], [1], [0, 0, 1, 1], [], []>} : vector<8x72xf32>, vector<72x256xf32>, vector<8x256xf32> -> vector<8x256xf32>
    %c2_134 = arith.constant 2 : index
    %c0_135 = arith.constant 0 : index
    %c0_136 = arith.constant 0 : index
    %125 = vector.load %arg3[%c2_134, %c0_135, %c0_136] : memref<4x8x1xf32, #tpu.memory_space<vmem>>, vector<1x8x1xf32>
    %126 = vector.shape_cast %125 : vector<1x8x1xf32> to vector<8x1xf32>
    %127 = vector.broadcast %126 : vector<8x1xf32> to vector<8x256xf32>
    %128 = arith.addf %124, %127 : vector<8x256xf32>
    %cst_137 = arith.constant 0.000000e+00 : f32
    %129 = vector.broadcast %cst_137 : f32 to vector<8x256xf32>
    %130 = arith.maximumf %128, %129 : vector<8x256xf32>
    %c17_i32_138 = arith.constant 17 : i32
    %131 = tpu.dynamic_rotate %130 by %c17_i32_138 dim 1 : vector<8x256xf32>, i32 -> vector<8x256xf32>
    %c0_139 = arith.constant 0 : index
    %c0_140 = arith.constant 0 : index
    %132 = vector.load %arg4[%c0_139, %c0_140] : memref<72x256xf32, #tpu.memory_space<vmem>>, vector<8x256xf32>
    %133 = arith.mulf %131, %132 : vector<8x256xf32>
    %c0_141 = arith.constant 0 : index
    %c0_142 = arith.constant 0 : index
    %134 = vector.load %arg6[%c0_141, %c0_142] : memref<72x256xf32, #tpu.memory_space<vmem>>, vector<8x256xf32>
    tpu.vector_store %arg6[%c0_141, %c0_142], %133 {strides = array<i32>} : memref<72x256xf32, #tpu.memory_space<vmem>>, vector<8x256xf32>,
    %c16_i32_143 = arith.constant 16 : i32
    %135 = tpu.dynamic_rotate %130 by %c16_i32_143 dim 1 : vector<8x256xf32>, i32 -> vector<8x256xf32>
    %c8_144 = arith.constant 8 : index
    %c0_145 = arith.constant 0 : index
    %136 = vector.load %arg4[%c8_144, %c0_145] : memref<72x256xf32, #tpu.memory_space<vmem>>, vector<8x256xf32>
    %137 = arith.mulf %135, %136 : vector<8x256xf32>
    %c8_146 = arith.constant 8 : index
    %c0_147 = arith.constant 0 : index
    %138 = vector.load %arg6[%c8_146, %c0_147] : memref<72x256xf32, #tpu.memory_space<vmem>>, vector<8x256xf32>
    tpu.vector_store %arg6[%c8_146, %c0_147], %137 {strides = array<i32>} : memref<72x256xf32, #tpu.memory_space<vmem>>, vector<8x256xf32>,
    %c15_i32_148 = arith.constant 15 : i32
    %139 = tpu.dynamic_rotate %130 by %c15_i32_148 dim 1 : vector<8x256xf32>, i32 -> vector<8x256xf32>
    %c16_149 = arith.constant 16 : index
    %c0_150 = arith.constant 0 : index
    %140 = vector.load %arg4[%c16_149, %c0_150] : memref<72x256xf32, #tpu.memory_space<vmem>>, vector<8x256xf32>
    %141 = arith.mulf %139, %140 : vector<8x256xf32>
    %c16_151 = arith.constant 16 : index
    %c0_152 = arith.constant 0 : index
    %142 = vector.load %arg6[%c16_151, %c0_152] : memref<72x256xf32, #tpu.memory_space<vmem>>, vector<8x256xf32>
    tpu.vector_store %arg6[%c16_151, %c0_152], %141 {strides = array<i32>} : memref<72x256xf32, #tpu.memory_space<vmem>>, vector<8x256xf32>,
    %c1_i32_153 = arith.constant 1 : i32
    %143 = tpu.dynamic_rotate %130 by %c1_i32_153 dim 1 : vector<8x256xf32>, i32 -> vector<8x256xf32>
    %c24_154 = arith.constant 24 : index
    %c0_155 = arith.constant 0 : index
    %144 = vector.load %arg4[%c24_154, %c0_155] : memref<72x256xf32, #tpu.memory_space<vmem>>, vector<8x256xf32>
    %145 = arith.mulf %143, %144 : vector<8x256xf32>
    %c24_156 = arith.constant 24 : index
    %c0_157 = arith.constant 0 : index
    %146 = vector.load %arg6[%c24_156, %c0_157] : memref<72x256xf32, #tpu.memory_space<vmem>>, vector<8x256xf32>
    tpu.vector_store %arg6[%c24_156, %c0_157], %145 {strides = array<i32>} : memref<72x256xf32, #tpu.memory_space<vmem>>, vector<8x256xf32>,
    %c32_158 = arith.constant 32 : index
    %c0_159 = arith.constant 0 : index
    %147 = vector.load %arg6[%c32_158, %c0_159] : memref<72x256xf32, #tpu.memory_space<vmem>>, vector<8x256xf32>
    tpu.vector_store %arg6[%c32_158, %c0_159], %130 {strides = array<i32>} : memref<72x256xf32, #tpu.memory_space<vmem>>, vector<8x256xf32>,
    %c255_i32_160 = arith.constant 255 : i32
    %148 = tpu.dynamic_rotate %130 by %c255_i32_160 dim 1 : vector<8x256xf32>, i32 -> vector<8x256xf32>
    %c40_161 = arith.constant 40 : index
    %c0_162 = arith.constant 0 : index
    %149 = vector.load %arg4[%c40_161, %c0_162] : memref<72x256xf32, #tpu.memory_space<vmem>>, vector<8x256xf32>
    %150 = arith.mulf %148, %149 : vector<8x256xf32>
    %c40_163 = arith.constant 40 : index
    %c0_164 = arith.constant 0 : index
    %151 = vector.load %arg6[%c40_163, %c0_164] : memref<72x256xf32, #tpu.memory_space<vmem>>, vector<8x256xf32>
    tpu.vector_store %arg6[%c40_163, %c0_164], %150 {strides = array<i32>} : memref<72x256xf32, #tpu.memory_space<vmem>>, vector<8x256xf32>,
    %c241_i32_165 = arith.constant 241 : i32
    %152 = tpu.dynamic_rotate %130 by %c241_i32_165 dim 1 : vector<8x256xf32>, i32 -> vector<8x256xf32>
    %c48_166 = arith.constant 48 : index
    %c0_167 = arith.constant 0 : index
    %153 = vector.load %arg4[%c48_166, %c0_167] : memref<72x256xf32, #tpu.memory_space<vmem>>, vector<8x256xf32>
    %154 = arith.mulf %152, %153 : vector<8x256xf32>
    %c48_168 = arith.constant 48 : index
    %c0_169 = arith.constant 0 : index
    %155 = vector.load %arg6[%c48_168, %c0_169] : memref<72x256xf32, #tpu.memory_space<vmem>>, vector<8x256xf32>
    tpu.vector_store %arg6[%c48_168, %c0_169], %154 {strides = array<i32>} : memref<72x256xf32, #tpu.memory_space<vmem>>, vector<8x256xf32>,
    %c240_i32_170 = arith.constant 240 : i32
    %156 = tpu.dynamic_rotate %130 by %c240_i32_170 dim 1 : vector<8x256xf32>, i32 -> vector<8x256xf32>
    %c56_171 = arith.constant 56 : index
    %c0_172 = arith.constant 0 : index
    %157 = vector.load %arg4[%c56_171, %c0_172] : memref<72x256xf32, #tpu.memory_space<vmem>>, vector<8x256xf32>
    %158 = arith.mulf %156, %157 : vector<8x256xf32>
    %c56_173 = arith.constant 56 : index
    %c0_174 = arith.constant 0 : index
    %159 = vector.load %arg6[%c56_173, %c0_174] : memref<72x256xf32, #tpu.memory_space<vmem>>, vector<8x256xf32>
    tpu.vector_store %arg6[%c56_173, %c0_174], %158 {strides = array<i32>} : memref<72x256xf32, #tpu.memory_space<vmem>>, vector<8x256xf32>,
    %c239_i32_175 = arith.constant 239 : i32
    %160 = tpu.dynamic_rotate %130 by %c239_i32_175 dim 1 : vector<8x256xf32>, i32 -> vector<8x256xf32>
    %c64_176 = arith.constant 64 : index
    %c0_177 = arith.constant 0 : index
    %161 = vector.load %arg4[%c64_176, %c0_177] : memref<72x256xf32, #tpu.memory_space<vmem>>, vector<8x256xf32>
    %162 = arith.mulf %160, %161 : vector<8x256xf32>
    %c64_178 = arith.constant 64 : index
    %c0_179 = arith.constant 0 : index
    %163 = vector.load %arg6[%c64_178, %c0_179] : memref<72x256xf32, #tpu.memory_space<vmem>>, vector<8x256xf32>
    tpu.vector_store %arg6[%c64_178, %c0_179], %162 {strides = array<i32>} : memref<72x256xf32, #tpu.memory_space<vmem>>, vector<8x256xf32>,
    %c3 = arith.constant 3 : index
    %c0_180 = arith.constant 0 : index
    %c0_181 = arith.constant 0 : index
    %164 = vector.load %arg2[%c3, %c0_180, %c0_181] : memref<4x8x72xf32, #tpu.memory_space<vmem>>, vector<1x8x72xf32>
    %165 = vector.shape_cast %164 : vector<1x8x72xf32> to vector<8x72xf32>
    %c0_182 = arith.constant 0 : index
    %c0_183 = arith.constant 0 : index
    %166 = vector.load %arg6[%c0_182, %c0_183] : memref<72x256xf32, #tpu.memory_space<vmem>>, vector<72x256xf32>
    %cst_184 = arith.constant dense<0.000000e+00> : vector<8x256xf32>
    %167 = tpu.matmul %165, %166, %cst_184 {dimension_numbers = #tpu.dot_dimension_numbers<[1], [0], [0], [1], [0, 0, 1, 1], [], []>} : vector<8x72xf32>, vector<72x256xf32>, vector<8x256xf32> -> vector<8x256xf32>
    %c3_185 = arith.constant 3 : index
    %c0_186 = arith.constant 0 : index
    %c0_187 = arith.constant 0 : index
    %168 = vector.load %arg3[%c3_185, %c0_186, %c0_187] : memref<4x8x1xf32, #tpu.memory_space<vmem>>, vector<1x8x1xf32>
    %169 = vector.shape_cast %168 : vector<1x8x1xf32> to vector<8x1xf32>
    %170 = vector.broadcast %169 : vector<8x1xf32> to vector<8x256xf32>
    %171 = arith.addf %167, %170 : vector<8x256xf32>
    %172 = arith.addf %171, %87 : vector<8x256xf32>
    %cst_188 = arith.constant 0.000000e+00 : f32
    %173 = vector.broadcast %cst_188 : f32 to vector<8x256xf32>
    %174 = arith.maximumf %172, %173 : vector<8x256xf32>
    %c0_189 = arith.constant 0 : index
    %c0_190 = arith.constant 0 : index
    %175 = vector.load %arg5[%c0_189, %c0_190] : memref<8x256xf32, #tpu.memory_space<vmem>>, vector<8x256xf32>
    tpu.vector_store %arg5[%c0_189, %c0_190], %174 {strides = array<i32>} : memref<8x256xf32, #tpu.memory_space<vmem>>, vector<8x256xf32>,
    return
  }
  func.func @transform_0(%arg0: i32) -> (i32, i32) {
    %c0_i32 = arith.constant 0 : i32
    %c0_i32_0 = arith.constant 0 : i32
    return %c0_i32, %arg0 : i32, i32
  }
  func.func @transform_1(%arg0: i32) -> (i32, i32, i32) {
    %c0_i32 = arith.constant 0 : i32
    %c0_i32_0 = arith.constant 0 : i32
    %c0_i32_1 = arith.constant 0 : i32
    %c0_i32_2 = arith.constant 0 : i32
    return %c0_i32, %c0_i32_0, %c0_i32_1 : i32, i32, i32
  }
  func.func @transform_2(%arg0: i32) -> (i32, i32, i32) {
    %c0_i32 = arith.constant 0 : i32
    %c0_i32_0 = arith.constant 0 : i32
    %c0_i32_1 = arith.constant 0 : i32
    %c0_i32_2 = arith.constant 0 : i32
    return %c0_i32, %c0_i32_0, %c0_i32_1 : i32, i32, i32
  }
  func.func @transform_3(%arg0: i32) -> (i32, i32) {
    %c0_i32 = arith.constant 0 : i32
    %c0_i32_0 = arith.constant 0 : i32
    %c0_i32_1 = arith.constant 0 : i32
    return %c0_i32, %c0_i32_0 : i32, i32
  }
  func.func @transform_4(%arg0: i32) -> (i32, i32) {
    %c0_i32 = arith.constant 0 : i32
    %c0_i32_0 = arith.constant 0 : i32
    return %c0_i32, %arg0 : i32, i32
  }
}

</mosaic_0001>

<llo_original>
// kernel: tpu_custom_call.1
$region0: #{tpu_custom_call.1}
  #allocation0 [shape = 'u32[]', space=smem, size = 0x4, offset = 0x4, fixed_abs, tag = 'smem constant byte address 0x4 - core index']
  #allocation1 [shape = 'u32[72,128]{1,0:T(1,128)}', space=vmem, size = 0x9000, scoped, tag = 'internal scratch']
  #allocation2 [shape = 'f32[72,256]{1,0:T(8,128)}', space=vmem, size = 0x12000, scoped, tag = 'scratch operand']
  %s0 = inlined_call_operand.vmem [shape: f32[8,512], index: 0, kind: input, shape index: {}]
  %s1 = inlined_call_operand.hbm [shape: f32[4,8,72], index: 1, kind: input, shape index: {}]
  %s2 = inlined_call_operand.vmem [shape: f32[4,8,1], index: 2, kind: input, shape index: {}]
  %s3 = inlined_call_operand.hbm [shape: f32[72,256], index: 3, kind: input, shape index: {}]
  %s4 = inlined_call_operand.hbm [shape: f32[8,512], index: 4, kind: output, shape index: {}]
  %s5 = sld [smem:[#allocation0]]
  $region57: #{tpu_custom_call.1} parent=0
    _
  %s7 = ssub.s32 1, %s5
  %s8 = scalar_select 0, %s7, %s5
  $region1: #{tpu_custom_call.1} parent=0
    #allocation3 [shape = 'u8[16384]{0}', space=vmem, size = 0x4000, scoped, tag = 'input window, operand 1, single buffered']
    #allocation4 [shape = 's32[2]{0}', space=sflag, size = 0x8, scoped, tag = 'scoped memory for tpu_custom_call.1']
    #allocation5 [shape = 's32[2]{0}', space=sflag, size = 0x8, scoped, tag = 'scoped memory for tpu_custom_call.1']
    #allocation6 [shape = 'u8[73728]{0}', space=vmem, size = 0x12000, scoped, tag = 'input window, operand 3, single buffered']
    #allocation7 [shape = 's32[1]{0}', space=sflag, size = 0x4, scoped, tag = 'scoped memory for tpu_custom_call.1']
    #allocation8 [shape = 'u8[16384]{0}', space=vmem, size = 0x4000, scoped, tag = 'output window, operand 0']
    %9 = vsyncpa [#allocation4], 0
    %10 = vsyncpa [#allocation7], 0
    %11 = vsyncpa [#allocation5], 0
    %s12 = scalar_lea.sflag [#allocation5], 1
    %13 = vsyncpa %s12, 0
    loop: start=0, step=1, limit=4
    $region2: #{tpu_custom_call.1} parent=1 // loop_pre_header
      _
    $region3: #{tpu_custom_call.1} parent=1 // loop_header
      %s15 = sphi 0, %s19
      %p16 = scmp.ge.s32.totalorder %s15, 4
      %s25 = sphi 0, %s27
      %s28 = sphi 0, %s25
      %s29 = sphi 0, %s28
      %s45 = sphi 0, %s29
      %s49 = sphi 0, %s49
      %s51 = sphi 0, %s49
      %s52 = sphi 0, %s51
      %s66 = sphi 0, %s52
      %s70 = sphi 0, %s70
      %s72 = sphi 0, %s70
      %s73 = sphi 0, %s72
      %s87 = sphi 0, %s73
      %s91 = sphi 0, %s91
      %s93 = sphi 0, %s91
      %s94 = sphi 0, %s93
      %s108 = sphi 0, %s94
      %s114 = sphi 0, %s116
      %s117 = sphi 0, %s114
      %s118 = sphi 0, %s117
      %s134 = sphi 0, %s118
    $region4: #{tpu_custom_call.1} parent=1 // loop_header_branch
      %18 = sbr.rel (%p16) target = $region8
    $region5: #{tpu_custom_call.1} parent=1 // loop_body
      %s20 = ssub.s32 %s15, 1
      %s21 = ssub.s32 %s15, 2
      %s22 = sadd.s32 %s15, 1
      %s23 = ssub.s32 %s15, %s22
      %p24 = scmp.eq.s32.totalorder %s23, 0
      %s26 = sadd.s32 %s25, 1
      %s27 = scalar_select %p24, %s25, %s26
      %p30 = pneg %p24
      %p31 = scmp.eq.s32.totalorder %s15, 1
      %p32 = por %p30, %p31
      %p33 = scmp.ne.s32.totalorder %s25, %s28
      %p34 = scmp.eq.s32.totalorder %s15, 0
      %p35 = por %p33, %p34
      %p36 = scmp.ne.s32.totalorder %s25, %s28
      %p37 = scmp.eq.s32.totalorder %s20, 1
      %p38 = por %p36, %p37
      %p39 = scmp.ne.s32.totalorder %s28, %s29
      %p40 = scmp.eq.s32.totalorder %s20, 0
      %p41 = por %p39, %p40
      %p42 = scmp.ne.s32.totalorder %s28, %s29
      %p43 = scmp.eq.s32.totalorder %s21, 1
      %p44 = por %p42, %p43
      %p46 = scmp.ne.s32.totalorder %s29, %s45
      %p47 = scmp.eq.s32.totalorder %s21, 0
      %p48 = por %p46, %p47
      %s50 = sadd.s32 %s49, 1
      %p53 = scmp.eq.s32.totalorder %s15, 1
      %p54 = scmp.ne.s32.totalorder %s49, %s51
      %p55 = scmp.eq.s32.totalorder %s15, 0
      %p56 = por %p54, %p55
      %p57 = scmp.ne.s32.totalorder %s49, %s51
      %p58 = scmp.eq.s32.totalorder %s20, 1
      %p59 = por %p57, %p58
      %p60 = scmp.ne.s32.totalorder %s51, %s52
      %p61 = scmp.eq.s32.totalorder %s20, 0
      %p62 = por %p60, %p61
      %p63 = scmp.ne.s32.totalorder %s51, %s52
      %p64 = scmp.eq.s32.totalorder %s21, 1
      %p65 = por %p63, %p64
      %p67 = scmp.ne.s32.totalorder %s52, %s66
      %p68 = scmp.eq.s32.totalorder %s21, 0
      %p69 = por %p67, %p68
      %s71 = sadd.s32 %s70, 1
      %p74 = scmp.eq.s32.totalorder %s15, 1
      %p75 = scmp.ne.s32.totalorder %s70, %s72
      %p76 = scmp.eq.s32.totalorder %s15, 0
      %p77 = por %p75, %p76
      %p78 = scmp.ne.s32.totalorder %s70, %s72
      %p79 = scmp.eq.s32.totalorder %s20, 1
      %p80 = por %p78, %p79
      %p81 = scmp.ne.s32.totalorder %s72, %s73
      %p82 = scmp.eq.s32.totalorder %s20, 0
      %p83 = por %p81, %p82
      %p84 = scmp.ne.s32.totalorder %s72, %s73
      %p85 = scmp.eq.s32.totalorder %s21, 1
      %p86 = por %p84, %p85
      %p88 = scmp.ne.s32.totalorder %s73, %s87
      %p89 = scmp.eq.s32.totalorder %s21, 0
      %p90 = por %p88, %p89
      %s92 = sadd.s32 %s91, 1
      %p95 = scmp.eq.s32.totalorder %s15, 1
      %p96 = scmp.ne.s32.totalorder %s91, %s93
      %p97 = scmp.eq.s32.totalorder %s15, 0
      %p98 = por %p96, %p97
      %p99 = scmp.ne.s32.totalorder %s91, %s93
      %p100 = scmp.eq.s32.totalorder %s20, 1
      %p101 = por %p99, %p100
      %p102 = scmp.ne.s32.totalorder %s93, %s94
      %p103 = scmp.eq.s32.totalorder %s20, 0
      %p104 = por %p102, %p103
      %p105 = scmp.ne.s32.totalorder %s93, %s94
      %p106 = scmp.eq.s32.totalorder %s21, 1
      %p107 = por %p105, %p106
      %p109 = scmp.ne.s32.totalorder %s94, %s108
      %p110 = scmp.eq.s32.totalorder %s21, 0
      %p111 = por %p109, %p110
      %s112 = ssub.s32 %s15, %s22
      %p113 = scmp.eq.s32.totalorder %s112, 0
      %s115 = sadd.s32 %s114, 1
      %s116 = scalar_select %p113, %s114, %s115
      %p119 = pneg %p113
      %p120 = scmp.eq.s32.totalorder %s15, 1
      %p121 = por %p119, %p120
      %p122 = scmp.ne.s32.totalorder %s114, %s117
      %p123 = scmp.eq.s32.totalorder %s15, 0
      %p124 = por %p122, %p123
      %p125 = scmp.ne.s32.totalorder %s114, %s117
      %p126 = scmp.eq.s32.totalorder %s20, 1
      %p127 = por %p125, %p126
      %p128 = scmp.ne.s32.totalorder %s117, %s118
      %p129 = scmp.eq.s32.totalorder %s20, 0
      %p130 = por %p128, %p129
      %p131 = scmp.ne.s32.totalorder %s117, %s118
      %p132 = scmp.eq.s32.totalorder %s21, 1
      %p133 = por %p131, %p132
      %p135 = scmp.ne.s32.totalorder %s118, %s134
      %p136 = scmp.eq.s32.totalorder %s21, 0
      %p137 = por %p135, %p136
      %p138 = scmp.le.s32.totalorder 1, %s15
      %p139 = scmp.lt.s32.totalorder %s15, 3
      %p140 = pnand %p138, %p139
      %p141 = pneg %p140
      // Predicated region
      $region9: #{tpu_custom_call.1} parent=5 // pred_check
        _
      $region10: #{tpu_custom_call.1} parent=5 // pred_check_branch
        %143 = sbr.rel (%p140) target = $region12
      $region11: #{tpu_custom_call.1} parent=5 // pred_region
        %s144 = ssub.s32 %s15, 1
        // Predicated region
        $region13: #{tpu_custom_call.1} parent=11 // pred_check
          %p145 = pneg %p62
        $region14: #{tpu_custom_call.1} parent=11 // pred_check_branch
          %147 = sbr.rel (%p145) target = $region16
        $region15: #{tpu_custom_call.1} parent=11 // pred_region
          %149 = vsyncadd [#allocation4], 0
          %s150 = sshll.u32 %s1, 4
          %s151 = int_to_ptr.hbm [resolvable:$true] %s150
          %s152 = sshll.u32 [#allocation3], 4
          %s153 = int_to_ptr.vmem [resolvable:$true] %s152
          %158 = dma.hbm_to_vmem [thread:$0]  %s151, 512, %s153, [#allocation4], 128, 128, 8
        $region16: #{tpu_custom_call.1} parent=11 // pred_fallthru
          _
        // Predicated region
        $region17: #{tpu_custom_call.1} parent=11 // pred_check
          %p159 = pneg %p83
        $region18: #{tpu_custom_call.1} parent=11 // pred_check_branch
          %161 = sbr.rel (%p159) target = $region20
        $region19: #{tpu_custom_call.1} parent=11 // pred_region
          _
        $region20: #{tpu_custom_call.1} parent=11 // pred_fallthru
          _
        // Predicated region
        $region21: #{tpu_custom_call.1} parent=11 // pred_check
          %p162 = pneg %p104
        $region22: #{tpu_custom_call.1} parent=11 // pred_check_branch
          %164 = sbr.rel (%p162) target = $region24
        $region23: #{tpu_custom_call.1} parent=11 // pred_region
          %166 = vsyncadd [#allocation7], 0
          %s167 = sshll.u32 %s3, 4
          %s168 = int_to_ptr.hbm [resolvable:$true] %s167
          %s169 = sshll.u32 [#allocation6], 4
          %s170 = int_to_ptr.vmem [resolvable:$true] %s169
          %175 = dma.hbm_to_vmem [thread:$0]  %s168, 2304, %s170, [#allocation7], 256, 256, 16
        $region24: #{tpu_custom_call.1} parent=11 // pred_fallthru
          _
      $region12: #{tpu_custom_call.1} parent=5 // pred_fallthru
        _
      %p176 = scmp.lt.s32.totalorder %s15, 2
      // Predicated region
      $region25: #{tpu_custom_call.1} parent=5 // pred_check
        %p177 = pneg %p176
      $region26: #{tpu_custom_call.1} parent=5 // pred_check_branch
        %179 = sbr.rel (%p177) target = $region28
      $region27: #{tpu_custom_call.1} parent=5 // pred_region
        // Predicated region
        $region29: #{tpu_custom_call.1} parent=27 // pred_check
          %p180 = pneg %p35
        $region30: #{tpu_custom_call.1} parent=27 // pred_check_branch
          %182 = sbr.rel (%p180) target = $region32
        $region31: #{tpu_custom_call.1} parent=27 // pred_region
          %s183 = smul.u32 2, %s15
          %p184 = scmp.lt.s32.totalorder %s183, 3
          %s185 = scalar_select %p184, %s183, 3
          %s186 = smul.addr %s185, 8
          %s187 = scalar_lea.vmem %s0, %s186
          %s188 = smul.u32 2, %s15
        $region32: #{tpu_custom_call.1} parent=27 // pred_fallthru
          _
      $region28: #{tpu_custom_call.1} parent=5 // pred_fallthru
        _
      %p189 = scmp.le.s32.totalorder 1, %s15
      %p190 = scmp.lt.s32.totalorder %s15, 3
      %p191 = pnand %p189, %p190
      %p192 = pneg %p191
      // Predicated region
      $region33: #{tpu_custom_call.1} parent=5 // pred_check
        _
      $region34: #{tpu_custom_call.1} parent=5 // pred_check_branch
        %194 = sbr.rel (%p191) target = $region36
      $region35: #{tpu_custom_call.1} parent=5 // pred_region
        %s195 = ssub.s32 %s15, 1
        // Predicated region
        $region37: #{tpu_custom_call.1} parent=35 // pred_check
          %p196 = pneg %p62
        $region38: #{tpu_custom_call.1} parent=35 // pred_check_branch
          %198 = sbr.rel (%p196) target = $region40
        $region39: #{tpu_custom_call.1} parent=35 // pred_region
          %200 = dma.done [#allocation4], 512
        $region40: #{tpu_custom_call.1} parent=35 // pred_fallthru
          _
        // Predicated region
        $region41: #{tpu_custom_call.1} parent=35 // pred_check
          %p201 = pneg %p104
        $region42: #{tpu_custom_call.1} parent=35 // pred_check_branch
          %203 = sbr.rel (%p201) target = $region44
        $region43: #{tpu_custom_call.1} parent=35 // pred_region
          %205 = dma.done [#allocation7], 2304
        $region44: #{tpu_custom_call.1} parent=35 // pred_fallthru
          _
        %s206 = smul.u32 2, %s20
        %p207 = scmp.lt.s32.totalorder %s206, 3
        %s208 = scalar_select %p207, %s206, 3
        %s209 = smul.addr %s208, 8
        %s210 = scalar_lea.vmem %s0, %s209
        %p211 = pneg %p41
        %p212 = pneg %p38
        %p213 = pneg %p62
        %p214 = pneg %p59
        %p215 = pneg %p83
        %p216 = pneg %p80
        %p217 = pneg %p104
        %p218 = pneg %p101
        %p219 = pneg %p130
        %p220 = pneg %p127
        %s221 = sand.u32 %s117, 1
        %s222 = scalar_lea.sflag [#allocation5], %s221
        %s223 = sand.u32 %s117, 1
        %s224 = smul.addr %s223, 16
        %s225 = scalar_lea.vmem [#allocation8], %s224
        %s226 = smul.u32 2, %s20
        %p227 = scmp.lt.s32.totalorder %s226, 3
        %s228 = scalar_select %p227, %s226, 3
        %s229 = smul.addr %s228, 8
        %s230 = scalar_lea.vmem %s0, %s229
        %s231 = smul.u32 2, %s20
        %s232 = smul.u32 2, %s20
        %v233 = vld [vmem:[%s230] sm:$0xff]
        %v234 = vld [vmem:[%s230 + $0x8] sm:$0xff]
        %235 = vrot.lane.b32.xlu0 %v233, 17
        %v236 = vpop.permute.xlu0 %235
        %237 = vrot.lane.b32.xlu0 %v234, 17
        %v238 = vpop.permute.xlu0 %237
        %v239 = vlaneseq
        %v240 = vand.u32 %v239, 127
        %vm241 = vcmp.lt.s32.totalorder %v240, 17
        %v242 = vsel %vm241, %v236, %v238
        %v243 = vsel %vm241, %v238, %v236
        %v244 = vld [vmem:[#allocation6] sm:$0xff]
        %v245 = vld [vmem:[#allocation6 + $0x8] sm:$0xff]
        %v246 = vmul.f32 %v243, %v244
        %v247 = vmul.f32 %v242, %v245
        %248 = vst [vmem:[#allocation2] sm:$0xff] %v246
        %249 = vst [vmem:[#allocation2 + $0x8] sm:$0xff] %v247
        %250 = vrot.lane.b32.xlu0 %v233, 16
        %v251 = vpop.permute.xlu0 %250
        %252 = vrot.lane.b32.xlu0 %v234, 16
        %v253 = vpop.permute.xlu0 %252
        %vm254 = vcmp.lt.s32.totalorder %v240, 16
        %v255 = vsel %vm254, %v251, %v253
        %v256 = vsel %vm254, %v253, %v251
        %v257 = vld [vmem:[#allocation6 + $0x10] sm:$0xff]
        %v258 = vld [vmem:[#allocation6 + $0x18] sm:$0xff]
        %v259 = vmul.f32 %v256, %v257
        %v260 = vmul.f32 %v255, %v258
        %261 = vst [vmem:[#allocation2 + $0x10] sm:$0xff] %v259
        %262 = vst [vmem:[#allocation2 + $0x18] sm:$0xff] %v260
        %263 = vrot.lane.b32.xlu0 %v233, 15
        %v264 = vpop.permute.xlu0 %263
        %265 = vrot.lane.b32.xlu0 %v234, 15
        %v266 = vpop.permute.xlu0 %265
        %vm267 = vcmp.lt.s32.totalorder %v240, 15
        %v268 = vsel %vm267, %v264, %v266
        %v269 = vsel %vm267, %v266, %v264
        %v270 = vld [vmem:[#allocation6 + $0x20] sm:$0xff]
        %v271 = vld [vmem:[#allocation6 + $0x28] sm:$0xff]
        %v272 = vmul.f32 %v269, %v270
        %v273 = vmul.f32 %v268, %v271
        %274 = vst [vmem:[#allocation2 + $0x20] sm:$0xff] %v272
        %275 = vst [vmem:[#allocation2 + $0x28] sm:$0xff] %v273
        %276 = vrot.lane.b32.xlu0 %v233, 1
        %v277 = vpop.permute.xlu0 %276
        %278 = vrot.lane.b32.xlu0 %v234, 1
        %v279 = vpop.permute.xlu0 %278
        %vm280 = vcmp.lt.s32.totalorder %v240, 1
        %v281 = vsel %vm280, %v277, %v279
        %v282 = vsel %vm280, %v279, %v277
        %v283 = vld [vmem:[#allocation6 + $0x30] sm:$0xff]
        %v284 = vld [vmem:[#allocation6 + $0x38] sm:$0xff]
        %v285 = vmul.f32 %v282, %v283
        %v286 = vmul.f32 %v281, %v284
        %287 = vst [vmem:[#allocation2 + $0x30] sm:$0xff] %v285
        %288 = vst [vmem:[#allocation2 + $0x38] sm:$0xff] %v286
        %289 = vst [vmem:[#allocation2 + $0x40] sm:$0xff] %v233
        %290 = vst [vmem:[#allocation2 + $0x48] sm:$0xff] %v234
        %291 = vrot.lane.b32.xlu0 %v233, 127
        %v292 = vpop.permute.xlu0 %291
        %293 = vrot.lane.b32.xlu0 %v234, 127
        %v294 = vpop.permute.xlu0 %293
        %vm295 = vcmp.lt.s32.totalorder %v240, 127
        %v296 = vsel %vm295, %v292, %v294
        %v297 = vsel %vm295, %v294, %v292
        %v298 = vld [vmem:[#allocation6 + $0x50] sm:$0xff]
        %v299 = vld [vmem:[#allocation6 + $0x58] sm:$0xff]
        %v300 = vmul.f32 %v296, %v298
        %v301 = vmul.f32 %v297, %v299
        %302 = vst [vmem:[#allocation2 + $0x50] sm:$0xff] %v300
        %303 = vst [vmem:[#allocation2 + $0x58] sm:$0xff] %v301
        %304 = vrot.lane.b32.xlu0 %v233, 113
        %v305 = vpop.permute.xlu0 %304
        %306 = vrot.lane.b32.xlu0 %v234, 113
        %v307 = vpop.permute.xlu0 %306
        %vm308 = vcmp.lt.s32.totalorder %v240, 113
        %v309 = vsel %vm308, %v305, %v307
        %v310 = vsel %vm308, %v307, %v305
        %v311 = vld [vmem:[#allocation6 + $0x60] sm:$0xff]
        %v312 = vld [vmem:[#allocation6 + $0x68] sm:$0xff]
        %v313 = vmul.f32 %v309, %v311
        %v314 = vmul.f32 %v310, %v312
        %315 = vst [vmem:[#allocation2 + $0x60] sm:$0xff] %v313
        %316 = vst [vmem:[#allocation2 + $0x68] sm:$0xff] %v314
        %317 = vrot.lane.b32.xlu0 %v233, 112
        %v318 = vpop.permute.xlu0 %317
        %319 = vrot.lane.b32.xlu0 %v234, 112
        %v320 = vpop.permute.xlu0 %319
        %vm321 = vcmp.lt.s32.totalorder %v240, 112
        %v322 = vsel %vm321, %v318, %v320
        %v323 = vsel %vm321, %v320, %v318
        %v324 = vld [vmem:[#allocation6 + $0x70] sm:$0xff]
        %v325 = vld [vmem:[#allocation6 + $0x78] sm:$0xff]
        %v326 = vmul.f32 %v322, %v324
        %v327 = vmul.f32 %v323, %v325
        %328 = vst [vmem:[#allocation2 + $0x70] sm:$0xff] %v326
        %329 = vst [vmem:[#allocation2 + $0x78] sm:$0xff] %v327
        %330 = vrot.lane.b32.xlu0 %v233, 111
        %v331 = vpop.permute.xlu0 %330
        %332 = vrot.lane.b32.xlu0 %v234, 111
        %v333 = vpop.permute.xlu0 %332
        %vm334 = vcmp.lt.s32.totalorder %v240, 111
        %v335 = vsel %vm334, %v331, %v333
        %v336 = vsel %vm334, %v333, %v331
        %v337 = vld [vmem:[#allocation6 + $0x80] sm:$0xff]
        %v338 = vld [vmem:[#allocation6 + $0x88] sm:$0xff]
        %v339 = vmul.f32 %v335, %v337
        %v340 = vmul.f32 %v336, %v338
        %341 = vst [vmem:[#allocation2 + $0x80] sm:$0xff] %v339
        %342 = vst [vmem:[#allocation2 + $0x88] sm:$0xff] %v340
        %v343 = vld [vmem:[#allocation3] sm:$0xff]
        %v344 = vld [vmem:[#allocation2] sm:$0xff]
        %v345 = vld [vmem:[#allocation2 + $0x8] sm:$0xff]
        %v346 = vld [vmem:[#allocation2 + $0x10] sm:$0xff]
        %v347 = vld [vmem:[#allocation2 + $0x18] sm:$0xff]
        %v348 = vld [vmem:[#allocation2 + $0x20] sm:$0xff]
        %v349 = vld [vmem:[#allocation2 + $0x28] sm:$0xff]
        %v350 = vld [vmem:[#allocation2 + $0x30] sm:$0xff]
        %v351 = vld [vmem:[#allocation2 + $0x38] sm:$0xff]
        %v352 = vld [vmem:[#allocation2 + $0x40] sm:$0xff]
        %v353 = vld [vmem:[#allocation2 + $0x48] sm:$0xff]
        %v354 = vld [vmem:[#allocation2 + $0x50] sm:$0xff]
        %v355 = vld [vmem:[#allocation2 + $0x58] sm:$0xff]
        %v356 = vld [vmem:[#allocation2 + $0x60] sm:$0xff]
        %v357 = vld [vmem:[#allocation2 + $0x68] sm:$0xff]
        %v358 = vld [vmem:[#allocation2 + $0x70] sm:$0xff]
        %v359 = vld [vmem:[#allocation2 + $0x78] sm:$0xff]
        %v360 = vld [vmem:[#allocation2 + $0x80] sm:$0xff]
        %v361 = vld [vmem:[#allocation2 + $0x88] sm:$0xff]
        %v362 = vld [vmem:[%s2] sm:$0xff]
        %364 = vset.pattern.permute.xlu0 0
        %365 = vperm.xlu0 %364, %v362
        %v366 = vpop.permute.xlu0 %365
        %vm368 = vcmask 588800
        %v370 = vsel %vm368, %v343, 0
        %372 = vmatpush.msra.mxu0 0.0
        %373 = vmatpush.msra.mxu0 0.0
        %374 = vmatpush.msra.mxu0 0.0
        %375 = vmatpush.msra.mxu0 0.0
        %376 = vmatpush.msra.mxu0 0.0
        %377 = vmatpush.msra.mxu0 0.0
        %378 = vmatpush.msra.mxu0 0.0
        %379 = vmatpush.msra.mxu0 %v360
        %380 = vmatpush.msra.mxu0 %v358
        %381 = vmatpush.msra.mxu0 %v356
        %382 = vmatpush.msra.mxu0 %v354
        %383 = vmatpush.msra.mxu0 %v352
        %384 = vmatpush.msra.mxu0 %v350
        %385 = vmatpush.msra.mxu0 %v348
        %386 = vmatpush.msra.mxu0 %v346
        %387 = vmatpush.msra.mxu0 %v344
        %388 = vmatmul.f32.gmra.mxu0 %v370
        %v389 = vpop.f32.mrf.mxu0
        %v390 = vadd.f32 %v366, %v389
        %391 = vdwg.mxu0
        %392 = vmatpush.msra.mxu0 0.0
        %393 = vmatpush.msra.mxu0 0.0
        %394 = vmatpush.msra.mxu0 0.0
        %395 = vmatpush.msra.mxu0 0.0
        %396 = vmatpush.msra.mxu0 0.0
        %397 = vmatpush.msra.mxu0 0.0
        %398 = vmatpush.msra.mxu0 0.0
        %399 = vmatpush.msra.mxu0 %v361
        %400 = vmatpush.msra.mxu0 %v359
        %401 = vmatpush.msra.mxu0 %v357
        %402 = vmatpush.msra.mxu0 %v355
        %403 = vmatpush.msra.mxu0 %v353
        %404 = vmatpush.msra.mxu0 %v351
        %405 = vmatpush.msra.mxu0 %v349
        %406 = vmatpush.msra.mxu0 %v347
        %407 = vmatpush.msra.mxu0 %v345
        %408 = vmatmul.f32.gmra.mxu0 %v370
        %v409 = vpop.f32.mrf.mxu0
        %v410 = vadd.f32 %v366, %v409
        %411 = vdwg.mxu0
        %v412 = vmax.f32 %v390, 0.0
        %v413 = vmax.f32 %v410, 0.0
        %414 = vrot.lane.b32.xlu0 %v412, 17
        %v415 = vpop.permute.xlu0 %414
        %416 = vrot.lane.b32.xlu0 %v413, 17
        %v417 = vpop.permute.xlu0 %416
        %v418 = vsel %vm241, %v415, %v417
        %v419 = vsel %vm241, %v417, %v415
        %v420 = vld [vmem:[#allocation6] sm:$0xff]
        %v421 = vld [vmem:[#allocation6 + $0x8] sm:$0xff]
        %v422 = vmul.f32 %v419, %v420
        %v423 = vmul.f32 %v418, %v421
        %424 = vst [vmem:[#allocation2] sm:$0xff] %v422
        %425 = vst [vmem:[#allocation2 + $0x8] sm:$0xff] %v423
        %426 = vrot.lane.b32.xlu0 %v412, 16
        %v427 = vpop.permute.xlu0 %426
        %428 = vrot.lane.b32.xlu0 %v413, 16
        %v429 = vpop.permute.xlu0 %428
        %v430 = vsel %vm254, %v427, %v429
        %v431 = vsel %vm254, %v429, %v427
        %v432 = vld [vmem:[#allocation6 + $0x10] sm:$0xff]
        %v433 = vld [vmem:[#allocation6 + $0x18] sm:$0xff]
        %v434 = vmul.f32 %v431, %v432
        %v435 = vmul.f32 %v430, %v433
        %436 = vst [vmem:[#allocation2 + $0x10] sm:$0xff] %v434
        %437 = vst [vmem:[#allocation2 + $0x18] sm:$0xff] %v435
        %438 = vrot.lane.b32.xlu0 %v412, 15
        %v439 = vpop.permute.xlu0 %438
        %440 = vrot.lane.b32.xlu0 %v413, 15
        %v441 = vpop.permute.xlu0 %440
        %v442 = vsel %vm267, %v439, %v441
        %v443 = vsel %vm267, %v441, %v439
        %v444 = vld [vmem:[#allocation6 + $0x20] sm:$0xff]
        %v445 = vld [vmem:[#allocation6 + $0x28] sm:$0xff]
        %v446 = vmul.f32 %v443, %v444
        %v447 = vmul.f32 %v442, %v445
        %448 = vst [vmem:[#allocation2 + $0x20] sm:$0xff] %v446
        %449 = vst [vmem:[#allocation2 + $0x28] sm:$0xff] %v447
        %450 = vrot.lane.b32.xlu0 %v412, 1
        %v451 = vpop.permute.xlu0 %450
        %452 = vrot.lane.b32.xlu0 %v413, 1
        %v453 = vpop.permute.xlu0 %452
        %v454 = vsel %vm280, %v451, %v453
        %v455 = vsel %vm280, %v453, %v451
        %v456 = vld [vmem:[#allocation6 + $0x30] sm:$0xff]
        %v457 = vld [vmem:[#allocation6 + $0x38] sm:$0xff]
        %v458 = vmul.f32 %v455, %v456
        %v459 = vmul.f32 %v454, %v457
        %460 = vst [vmem:[#allocation2 + $0x30] sm:$0xff] %v458
        %461 = vst [vmem:[#allocation2 + $0x38] sm:$0xff] %v459
        %462 = vst [vmem:[#allocation2 + $0x40] sm:$0xff] %v412
        %463 = vst [vmem:[#allocation2 + $0x48] sm:$0xff] %v413
        %464 = vrot.lane.b32.xlu0 %v412, 127
        %v465 = vpop.permute.xlu0 %464
        %466 = vrot.lane.b32.xlu0 %v413, 127
        %v467 = vpop.permute.xlu0 %466
        %v468 = vsel %vm295, %v465, %v467
        %v469 = vsel %vm295, %v467, %v465
        %v470 = vld [vmem:[#allocation6 + $0x50] sm:$0xff]
        %v471 = vld [vmem:[#allocation6 + $0x58] sm:$0xff]
        %v472 = vmul.f32 %v468, %v470
        %v473 = vmul.f32 %v469, %v471
        %474 = vst [vmem:[#allocation2 + $0x50] sm:$0xff] %v472
        %475 = vst [vmem:[#allocation2 + $0x58] sm:$0xff] %v473
        %476 = vrot.lane.b32.xlu0 %v412, 113
        %v477 = vpop.permute.xlu0 %476
        %478 = vrot.lane.b32.xlu0 %v413, 113
        %v479 = vpop.permute.xlu0 %478
        %v480 = vsel %vm308, %v477, %v479
        %v481 = vsel %vm308, %v479, %v477
        %v482 = vld [vmem:[#allocation6 + $0x60] sm:$0xff]
        %v483 = vld [vmem:[#allocation6 + $0x68] sm:$0xff]
        %v484 = vmul.f32 %v480, %v482
        %v485 = vmul.f32 %v481, %v483
        %486 = vst [vmem:[#allocation2 + $0x60] sm:$0xff] %v484
        %487 = vst [vmem:[#allocation2 + $0x68] sm:$0xff] %v485
        %488 = vrot.lane.b32.xlu0 %v412, 112
        %v489 = vpop.permute.xlu0 %488
        %490 = vrot.lane.b32.xlu0 %v413, 112
        %v491 = vpop.permute.xlu0 %490
        %v492 = vsel %vm321, %v489, %v491
        %v493 = vsel %vm321, %v491, %v489
        %v494 = vld [vmem:[#allocation6 + $0x70] sm:$0xff]
        %v495 = vld [vmem:[#allocation6 + $0x78] sm:$0xff]
        %v496 = vmul.f32 %v492, %v494
        %v497 = vmul.f32 %v493, %v495
        %498 = vst [vmem:[#allocation2 + $0x70] sm:$0xff] %v496
        %499 = vst [vmem:[#allocation2 + $0x78] sm:$0xff] %v497
        %500 = vrot.lane.b32.xlu0 %v412, 111
        %v501 = vpop.permute.xlu0 %500
        %502 = vrot.lane.b32.xlu0 %v413, 111
        %v503 = vpop.permute.xlu0 %502
        %v504 = vsel %vm334, %v501, %v503
        %v505 = vsel %vm334, %v503, %v501
        %v506 = vld [vmem:[#allocation6 + $0x80] sm:$0xff]
        %v507 = vld [vmem:[#allocation6 + $0x88] sm:$0xff]
        %v508 = vmul.f32 %v504, %v506
        %v509 = vmul.f32 %v505, %v507
        %510 = vst [vmem:[#allocation2 + $0x80] sm:$0xff] %v508
        %511 = vst [vmem:[#allocation2 + $0x88] sm:$0xff] %v509
        %s512 = scalar_lea.vmem [#allocation3], 8
        %v513 = vld [vmem:[%s512] sm:$0xff]
        %v514 = vld [vmem:[#allocation2] sm:$0xff]
        %v515 = vld [vmem:[#allocation2 + $0x8] sm:$0xff]
        %v516 = vld [vmem:[#allocation2 + $0x10] sm:$0xff]
        %v517 = vld [vmem:[#allocation2 + $0x18] sm:$0xff]
        %v518 = vld [vmem:[#allocation2 + $0x20] sm:$0xff]
        %v519 = vld [vmem:[#allocation2 + $0x28] sm:$0xff]
        %v520 = vld [vmem:[#allocation2 + $0x30] sm:$0xff]
        %v521 = vld [vmem:[#allocation2 + $0x38] sm:$0xff]
        %v522 = vld [vmem:[#allocation2 + $0x40] sm:$0xff]
        %v523 = vld [vmem:[#allocation2 + $0x48] sm:$0xff]
        %v524 = vld [vmem:[#allocation2 + $0x50] sm:$0xff]
        %v525 = vld [vmem:[#allocation2 + $0x58] sm:$0xff]
        %v526 = vld [vmem:[#allocation2 + $0x60] sm:$0xff]
        %v527 = vld [vmem:[#allocation2 + $0x68] sm:$0xff]
        %v528 = vld [vmem:[#allocation2 + $0x70] sm:$0xff]
        %v529 = vld [vmem:[#allocation2 + $0x78] sm:$0xff]
        %v530 = vld [vmem:[#allocation2 + $0x80] sm:$0xff]
        %v531 = vld [vmem:[#allocation2 + $0x88] sm:$0xff]
        %s532 = scalar_lea.vmem %s2, 8
        %v533 = vld [vmem:[%s532] sm:$0xff]
        %535 = vset.pattern.permute.xlu0 0
        %536 = vperm.xlu0 %535, %v533
        %v537 = vpop.permute.xlu0 %536
        %v540 = vsel %vm368, %v513, 0
        %542 = vmatpush.msra.mxu0 0.0
        %543 = vmatpush.msra.mxu0 0.0
        %544 = vmatpush.msra.mxu0 0.0
        %545 = vmatpush.msra.mxu0 0.0
        %546 = vmatpush.msra.mxu0 0.0
        %547 = vmatpush.msra.mxu0 0.0
        %548 = vmatpush.msra.mxu0 0.0
        %549 = vmatpush.msra.mxu0 %v530
        %550 = vmatpush.msra.mxu0 %v528
        %551 = vmatpush.msra.mxu0 %v526
        %552 = vmatpush.msra.mxu0 %v524
        %553 = vmatpush.msra.mxu0 %v522
        %554 = vmatpush.msra.mxu0 %v520
        %555 = vmatpush.msra.mxu0 %v518
        %556 = vmatpush.msra.mxu0 %v516
        %557 = vmatpush.msra.mxu0 %v514
        %558 = vmatmul.f32.gmra.mxu0 %v540
        %v559 = vpop.f32.mrf.mxu0
        %v560 = vadd.f32 %v537, %v559
        %561 = vdwg.mxu0
        %562 = vmatpush.msra.mxu0 0.0
        %563 = vmatpush.msra.mxu0 0.0
        %564 = vmatpush.msra.mxu0 0.0
        %565 = vmatpush.msra.mxu0 0.0
        %566 = vmatpush.msra.mxu0 0.0
        %567 = vmatpush.msra.mxu0 0.0
        %568 = vmatpush.msra.mxu0 0.0
        %569 = vmatpush.msra.mxu0 %v531
        %570 = vmatpush.msra.mxu0 %v529
        %571 = vmatpush.msra.mxu0 %v527
        %572 = vmatpush.msra.mxu0 %v525
        %573 = vmatpush.msra.mxu0 %v523
        %574 = vmatpush.msra.mxu0 %v521
        %575 = vmatpush.msra.mxu0 %v519
        %576 = vmatpush.msra.mxu0 %v517
        %577 = vmatpush.msra.mxu0 %v515
        %578 = vmatmul.f32.gmra.mxu0 %v540
        %v579 = vpop.f32.mrf.mxu0
        %v580 = vadd.f32 %v537, %v579
        %581 = vdwg.mxu0
        %v582 = vadd.f32 %v560, %v233
        %v583 = vadd.f32 %v580, %v234
        %v584 = vmax.f32 %v582, 0.0
        %v585 = vmax.f32 %v583, 0.0
        %586 = vrot.lane.b32.xlu0 %v584, 17
        %v587 = vpop.permute.xlu0 %586
        %588 = vrot.lane.b32.xlu0 %v585, 17
        %v589 = vpop.permute.xlu0 %588
        %v590 = vsel %vm241, %v587, %v589
        %v591 = vsel %vm241, %v589, %v587
        %v592 = vld [vmem:[#allocation6] sm:$0xff]
        %v593 = vld [vmem:[#allocation6 + $0x8] sm:$0xff]
        %v594 = vmul.f32 %v591, %v592
        %v595 = vmul.f32 %v590, %v593
        %596 = vst [vmem:[#allocation2] sm:$0xff] %v594
        %597 = vst [vmem:[#allocation2 + $0x8] sm:$0xff] %v595
        %598 = vrot.lane.b32.xlu0 %v584, 16
        %v599 = vpop.permute.xlu0 %598
        %600 = vrot.lane.b32.xlu0 %v585, 16
        %v601 = vpop.permute.xlu0 %600
        %v602 = vsel %vm254, %v599, %v601
        %v603 = vsel %vm254, %v601, %v599
        %v604 = vld [vmem:[#allocation6 + $0x10] sm:$0xff]
        %v605 = vld [vmem:[#allocation6 + $0x18] sm:$0xff]
        %v606 = vmul.f32 %v603, %v604
        %v607 = vmul.f32 %v602, %v605
        %608 = vst [vmem:[#allocation2 + $0x10] sm:$0xff] %v606
        %609 = vst [vmem:[#allocation2 + $0x18] sm:$0xff] %v607
        %610 = vrot.lane.b32.xlu0 %v584, 15
        %v611 = vpop.permute.xlu0 %610
        %612 = vrot.lane.b32.xlu0 %v585, 15
        %v613 = vpop.permute.xlu0 %612
        %v614 = vsel %vm267, %v611, %v613
        %v615 = vsel %vm267, %v613, %v611
        %v616 = vld [vmem:[#allocation6 + $0x20] sm:$0xff]
        %v617 = vld [vmem:[#allocation6 + $0x28] sm:$0xff]
        %v618 = vmul.f32 %v615, %v616
        %v619 = vmul.f32 %v614, %v617
        %620 = vst [vmem:[#allocation2 + $0x20] sm:$0xff] %v618
        %621 = vst [vmem:[#allocation2 + $0x28] sm:$0xff] %v619
        %622 = vrot.lane.b32.xlu0 %v584, 1
        %v623 = vpop.permute.xlu0 %622
        %624 = vrot.lane.b32.xlu0 %v585, 1
        %v625 = vpop.permute.xlu0 %624
        %v626 = vsel %vm280, %v623, %v625
        %v627 = vsel %vm280, %v625, %v623
        %v628 = vld [vmem:[#allocation6 + $0x30] sm:$0xff]
        %v629 = vld [vmem:[#allocation6 + $0x38] sm:$0xff]
        %v630 = vmul.f32 %v627, %v628
        %v631 = vmul.f32 %v626, %v629
        %632 = vst [vmem:[#allocation2 + $0x30] sm:$0xff] %v630
        %633 = vst [vmem:[#allocation2 + $0x38] sm:$0xff] %v631
        %634 = vst [vmem:[#allocation2 + $0x40] sm:$0xff] %v584
        %635 = vst [vmem:[#allocation2 + $0x48] sm:$0xff] %v585
        %636 = vrot.lane.b32.xlu0 %v584, 127
        %v637 = vpop.permute.xlu0 %636
        %638 = vrot.lane.b32.xlu0 %v585, 127
        %v639 = vpop.permute.xlu0 %638
        %v640 = vsel %vm295, %v637, %v639
        %v641 = vsel %vm295, %v639, %v637
        %v642 = vld [vmem:[#allocation6 + $0x50] sm:$0xff]
        %v643 = vld [vmem:[#allocation6 + $0x58] sm:$0xff]
        %v644 = vmul.f32 %v640, %v642
        %v645 = vmul.f32 %v641, %v643
        %646 = vst [vmem:[#allocation2 + $0x50] sm:$0xff] %v644
        %647 = vst [vmem:[#allocation2 + $0x58] sm:$0xff] %v645
        %648 = vrot.lane.b32.xlu0 %v584, 113
        %v649 = vpop.permute.xlu0 %648
        %650 = vrot.lane.b32.xlu0 %v585, 113
        %v651 = vpop.permute.xlu0 %650
        %v652 = vsel %vm308, %v649, %v651
        %v653 = vsel %vm308, %v651, %v649
        %v654 = vld [vmem:[#allocation6 + $0x60] sm:$0xff]
        %v655 = vld [vmem:[#allocation6 + $0x68] sm:$0xff]
        %v656 = vmul.f32 %v652, %v654
        %v657 = vmul.f32 %v653, %v655
        %658 = vst [vmem:[#allocation2 + $0x60] sm:$0xff] %v656
        %659 = vst [vmem:[#allocation2 + $0x68] sm:$0xff] %v657
        %660 = vrot.lane.b32.xlu0 %v584, 112
        %v661 = vpop.permute.xlu0 %660
        %662 = vrot.lane.b32.xlu0 %v585, 112
        %v663 = vpop.permute.xlu0 %662
        %v664 = vsel %vm321, %v661, %v663
        %v665 = vsel %vm321, %v663, %v661
        %v666 = vld [vmem:[#allocation6 + $0x70] sm:$0xff]
        %v667 = vld [vmem:[#allocation6 + $0x78] sm:$0xff]
        %v668 = vmul.f32 %v664, %v666
        %v669 = vmul.f32 %v665, %v667
        %670 = vst [vmem:[#allocation2 + $0x70] sm:$0xff] %v668
        %671 = vst [vmem:[#allocation2 + $0x78] sm:$0xff] %v669
        %672 = vrot.lane.b32.xlu0 %v584, 111
        %v673 = vpop.permute.xlu0 %672
        %674 = vrot.lane.b32.xlu0 %v585, 111
        %v675 = vpop.permute.xlu0 %674
        %v676 = vsel %vm334, %v673, %v675
        %v677 = vsel %vm334, %v675, %v673
        %v678 = vld [vmem:[#allocation6 + $0x80] sm:$0xff]
        %v679 = vld [vmem:[#allocation6 + $0x88] sm:$0xff]
        %v680 = vmul.f32 %v676, %v678
        %v681 = vmul.f32 %v677, %v679
        %682 = vst [vmem:[#allocation2 + $0x80] sm:$0xff] %v680
        %683 = vst [vmem:[#allocation2 + $0x88] sm:$0xff] %v681
        %s684 = scalar_lea.vmem [#allocation3], 16
        %v685 = vld [vmem:[%s684] sm:$0xff]
        %v686 = vld [vmem:[#allocation2] sm:$0xff]
        %v687 = vld [vmem:[#allocation2 + $0x8] sm:$0xff]
        %v688 = vld [vmem:[#allocation2 + $0x10] sm:$0xff]
        %v689 = vld [vmem:[#allocation2 + $0x18] sm:$0xff]
        %v690 = vld [vmem:[#allocation2 + $0x20] sm:$0xff]
        %v691 = vld [vmem:[#allocation2 + $0x28] sm:$0xff]
        %v692 = vld [vmem:[#allocation2 + $0x30] sm:$0xff]
        %v693 = vld [vmem:[#allocation2 + $0x38] sm:$0xff]
        %v694 = vld [vmem:[#allocation2 + $0x40] sm:$0xff]
        %v695 = vld [vmem:[#allocation2 + $0x48] sm:$0xff]
        %v696 = vld [vmem:[#allocation2 + $0x50] sm:$0xff]
        %v697 = vld [vmem:[#allocation2 + $0x58] sm:$0xff]
        %v698 = vld [vmem:[#allocation2 + $0x60] sm:$0xff]
        %v699 = vld [vmem:[#allocation2 + $0x68] sm:$0xff]
        %v700 = vld [vmem:[#allocation2 + $0x70] sm:$0xff]
        %v701 = vld [vmem:[#allocation2 + $0x78] sm:$0xff]
        %v702 = vld [vmem:[#allocation2 + $0x80] sm:$0xff]
        %v703 = vld [vmem:[#allocation2 + $0x88] sm:$0xff]
        %s704 = scalar_lea.vmem %s2, 16
        %v705 = vld [vmem:[%s704] sm:$0xff]
        %707 = vset.pattern.permute.xlu0 0
        %708 = vperm.xlu0 %707, %v705
        %v709 = vpop.permute.xlu0 %708
        %v712 = vsel %vm368, %v685, 0
        %714 = vmatpush.msra.mxu0 0.0
        %715 = vmatpush.msra.mxu0 0.0
        %716 = vmatpush.msra.mxu0 0.0
        %717 = vmatpush.msra.mxu0 0.0
        %718 = vmatpush.msra.mxu0 0.0
        %719 = vmatpush.msra.mxu0 0.0
        %720 = vmatpush.msra.mxu0 0.0
        %721 = vmatpush.msra.mxu0 %v702
        %722 = vmatpush.msra.mxu0 %v700
        %723 = vmatpush.msra.mxu0 %v698
        %724 = vmatpush.msra.mxu0 %v696
        %725 = vmatpush.msra.mxu0 %v694
        %726 = vmatpush.msra.mxu0 %v692
        %727 = vmatpush.msra.mxu0 %v690
        %728 = vmatpush.msra.mxu0 %v688
        %729 = vmatpush.msra.mxu0 %v686
        %730 = vmatmul.f32.gmra.mxu0 %v712
        %v731 = vpop.f32.mrf.mxu0
        %v732 = vadd.f32 %v709, %v731
        %733 = vdwg.mxu0
        %734 = vmatpush.msra.mxu0 0.0
        %735 = vmatpush.msra.mxu0 0.0
        %736 = vmatpush.msra.mxu0 0.0
        %737 = vmatpush.msra.mxu0 0.0
        %738 = vmatpush.msra.mxu0 0.0
        %739 = vmatpush.msra.mxu0 0.0
        %740 = vmatpush.msra.mxu0 0.0
        %741 = vmatpush.msra.mxu0 %v703
        %742 = vmatpush.msra.mxu0 %v701
        %743 = vmatpush.msra.mxu0 %v699
        %744 = vmatpush.msra.mxu0 %v697
        %745 = vmatpush.msra.mxu0 %v695
        %746 = vmatpush.msra.mxu0 %v693
        %747 = vmatpush.msra.mxu0 %v691
        %748 = vmatpush.msra.mxu0 %v689
        %749 = vmatpush.msra.mxu0 %v687
        %750 = vmatmul.f32.gmra.mxu0 %v712
        %v751 = vpop.f32.mrf.mxu0
        %v752 = vadd.f32 %v709, %v751
        %753 = vdwg.mxu0
        %v754 = vmax.f32 %v732, 0.0
        %v755 = vmax.f32 %v752, 0.0
        %756 = vrot.lane.b32.xlu0 %v754, 17
        %v757 = vpop.permute.xlu0 %756
        %758 = vrot.lane.b32.xlu0 %v755, 17
        %v759 = vpop.permute.xlu0 %758
        %v760 = vsel %vm241, %v757, %v759
        %v761 = vsel %vm241, %v759, %v757
        %v762 = vld [vmem:[#allocation6] sm:$0xff]
        %v763 = vld [vmem:[#allocation6 + $0x8] sm:$0xff]
        %v764 = vmul.f32 %v761, %v762
        %v765 = vmul.f32 %v760, %v763
        %766 = vst [vmem:[#allocation2] sm:$0xff] %v764
        %767 = vst [vmem:[#allocation2 + $0x8] sm:$0xff] %v765
        %768 = vrot.lane.b32.xlu0 %v754, 16
        %v769 = vpop.permute.xlu0 %768
        %770 = vrot.lane.b32.xlu0 %v755, 16
        %v771 = vpop.permute.xlu0 %770
        %v772 = vsel %vm254, %v769, %v771
        %v773 = vsel %vm254, %v771, %v769
        %v774 = vld [vmem:[#allocation6 + $0x10] sm:$0xff]
        %v775 = vld [vmem:[#allocation6 + $0x18] sm:$0xff]
        %v776 = vmul.f32 %v773, %v774
        %v777 = vmul.f32 %v772, %v775
        %778 = vst [vmem:[#allocation2 + $0x10] sm:$0xff] %v776
        %779 = vst [vmem:[#allocation2 + $0x18] sm:$0xff] %v777
        %780 = vrot.lane.b32.xlu0 %v754, 15
        %v781 = vpop.permute.xlu0 %780
        %782 = vrot.lane.b32.xlu0 %v755, 15
        %v783 = vpop.permute.xlu0 %782
        %v784 = vsel %vm267, %v781, %v783
        %v785 = vsel %vm267, %v783, %v781
        %v786 = vld [vmem:[#allocation6 + $0x20] sm:$0xff]
        %v787 = vld [vmem:[#allocation6 + $0x28] sm:$0xff]
        %v788 = vmul.f32 %v785, %v786
        %v789 = vmul.f32 %v784, %v787
        %790 = vst [vmem:[#allocation2 + $0x20] sm:$0xff] %v788
        %791 = vst [vmem:[#allocation2 + $0x28] sm:$0xff] %v789
        %792 = vrot.lane.b32.xlu0 %v754, 1
        %v793 = vpop.permute.xlu0 %792
        %794 = vrot.lane.b32.xlu0 %v755, 1
        %v795 = vpop.permute.xlu0 %794
        %v796 = vsel %vm280, %v793, %v795
        %v797 = vsel %vm280, %v795, %v793
        %v798 = vld [vmem:[#allocation6 + $0x30] sm:$0xff]
        %v799 = vld [vmem:[#allocation6 + $0x38] sm:$0xff]
        %v800 = vmul.f32 %v797, %v798
        %v801 = vmul.f32 %v796, %v799
        %802 = vst [vmem:[#allocation2 + $0x30] sm:$0xff] %v800
        %803 = vst [vmem:[#allocation2 + $0x38] sm:$0xff] %v801
        %804 = vst [vmem:[#allocation2 + $0x40] sm:$0xff] %v754
        %805 = vst [vmem:[#allocation2 + $0x48] sm:$0xff] %v755
        %806 = vrot.lane.b32.xlu0 %v754, 127
        %v807 = vpop.permute.xlu0 %806
        %808 = vrot.lane.b32.xlu0 %v755, 127
        %v809 = vpop.permute.xlu0 %808
        %v810 = vsel %vm295, %v807, %v809
        %v811 = vsel %vm295, %v809, %v807
        %v812 = vld [vmem:[#allocation6 + $0x50] sm:$0xff]
        %v813 = vld [vmem:[#allocation6 + $0x58] sm:$0xff]
        %v814 = vmul.f32 %v810, %v812
        %v815 = vmul.f32 %v811, %v813
        %816 = vst [vmem:[#allocation2 + $0x50] sm:$0xff] %v814
        %817 = vst [vmem:[#allocation2 + $0x58] sm:$0xff] %v815
        %818 = vrot.lane.b32.xlu0 %v754, 113
        %v819 = vpop.permute.xlu0 %818
        %820 = vrot.lane.b32.xlu0 %v755, 113
        %v821 = vpop.permute.xlu0 %820
        %v822 = vsel %vm308, %v819, %v821
        %v823 = vsel %vm308, %v821, %v819
        %v824 = vld [vmem:[#allocation6 + $0x60] sm:$0xff]
        %v825 = vld [vmem:[#allocation6 + $0x68] sm:$0xff]
        %v826 = vmul.f32 %v822, %v824
        %v827 = vmul.f32 %v823, %v825
        %828 = vst [vmem:[#allocation2 + $0x60] sm:$0xff] %v826
        %829 = vst [vmem:[#allocation2 + $0x68] sm:$0xff] %v827
        %830 = vrot.lane.b32.xlu0 %v754, 112
        %v831 = vpop.permute.xlu0 %830
        %832 = vrot.lane.b32.xlu0 %v755, 112
        %v833 = vpop.permute.xlu0 %832
        %v834 = vsel %vm321, %v831, %v833
        %v835 = vsel %vm321, %v833, %v831
        %v836 = vld [vmem:[#allocation6 + $0x70] sm:$0xff]
        %v837 = vld [vmem:[#allocation6 + $0x78] sm:$0xff]
        %v838 = vmul.f32 %v834, %v836
        %v839 = vmul.f32 %v835, %v837
        %840 = vst [vmem:[#allocation2 + $0x70] sm:$0xff] %v838
        %841 = vst [vmem:[#allocation2 + $0x78] sm:$0xff] %v839
        %842 = vrot.lane.b32.xlu0 %v754, 111
        %v843 = vpop.permute.xlu0 %842
        %844 = vrot.lane.b32.xlu0 %v755, 111
        %v845 = vpop.permute.xlu0 %844
        %v846 = vsel %vm334, %v843, %v845
        %v847 = vsel %vm334, %v845, %v843
        %v848 = vld [vmem:[#allocation6 + $0x80] sm:$0xff]
        %v849 = vld [vmem:[#allocation6 + $0x88] sm:$0xff]
        %v850 = vmul.f32 %v846, %v848
        %v851 = vmul.f32 %v847, %v849
        %852 = vst [vmem:[#allocation2 + $0x80] sm:$0xff] %v850
        %853 = vst [vmem:[#allocation2 + $0x88] sm:$0xff] %v851
        %s854 = scalar_lea.vmem [#allocation3], 24
        %v855 = vld [vmem:[%s854] sm:$0xff]
        %v856 = vld [vmem:[#allocation2] sm:$0xff]
        %v857 = vld [vmem:[#allocation2 + $0x8] sm:$0xff]
        %v858 = vld [vmem:[#allocation2 + $0x10] sm:$0xff]
        %v859 = vld [vmem:[#allocation2 + $0x18] sm:$0xff]
        %v860 = vld [vmem:[#allocation2 + $0x20] sm:$0xff]
        %v861 = vld [vmem:[#allocation2 + $0x28] sm:$0xff]
        %v862 = vld [vmem:[#allocation2 + $0x30] sm:$0xff]
        %v863 = vld [vmem:[#allocation2 + $0x38] sm:$0xff]
        %v864 = vld [vmem:[#allocation2 + $0x40] sm:$0xff]
        %v865 = vld [vmem:[#allocation2 + $0x48] sm:$0xff]
        %v866 = vld [vmem:[#allocation2 + $0x50] sm:$0xff]
        %v867 = vld [vmem:[#allocation2 + $0x58] sm:$0xff]
        %v868 = vld [vmem:[#allocation2 + $0x60] sm:$0xff]
        %v869 = vld [vmem:[#allocation2 + $0x68] sm:$0xff]
        %v870 = vld [vmem:[#allocation2 + $0x70] sm:$0xff]
        %v871 = vld [vmem:[#allocation2 + $0x78] sm:$0xff]
        %v872 = vld [vmem:[#allocation2 + $0x80] sm:$0xff]
        %v873 = vld [vmem:[#allocation2 + $0x88] sm:$0xff]
        %s874 = scalar_lea.vmem %s2, 24
        %v875 = vld [vmem:[%s874] sm:$0xff]
        %877 = vset.pattern.permute.xlu0 0
        %878 = vperm.xlu0 %877, %v875
        %v879 = vpop.permute.xlu0 %878
        %v882 = vsel %vm368, %v855, 0
        %884 = vmatpush.msra.mxu0 0.0
        %885 = vmatpush.msra.mxu0 0.0
        %886 = vmatpush.msra.mxu0 0.0
        %887 = vmatpush.msra.mxu0 0.0
        %888 = vmatpush.msra.mxu0 0.0
        %889 = vmatpush.msra.mxu0 0.0
        %890 = vmatpush.msra.mxu0 0.0
        %891 = vmatpush.msra.mxu0 %v872
        %892 = vmatpush.msra.mxu0 %v870
        %893 = vmatpush.msra.mxu0 %v868
        %894 = vmatpush.msra.mxu0 %v866
        %895 = vmatpush.msra.mxu0 %v864
        %896 = vmatpush.msra.mxu0 %v862
        %897 = vmatpush.msra.mxu0 %v860
        %898 = vmatpush.msra.mxu0 %v858
        %899 = vmatpush.msra.mxu0 %v856
        %900 = vmatmul.f32.gmra.mxu0 %v882
        %v901 = vpop.f32.mrf.mxu0
        %v902 = vadd.f32 %v879, %v901
        %903 = vdwg.mxu0
        %904 = vmatpush.msra.mxu0 0.0
        %905 = vmatpush.msra.mxu0 0.0
        %906 = vmatpush.msra.mxu0 0.0
        %907 = vmatpush.msra.mxu0 0.0
        %908 = vmatpush.msra.mxu0 0.0
        %909 = vmatpush.msra.mxu0 0.0
        %910 = vmatpush.msra.mxu0 0.0
        %911 = vmatpush.msra.mxu0 %v873
        %912 = vmatpush.msra.mxu0 %v871
        %913 = vmatpush.msra.mxu0 %v869
        %914 = vmatpush.msra.mxu0 %v867
        %915 = vmatpush.msra.mxu0 %v865
        %916 = vmatpush.msra.mxu0 %v863
        %917 = vmatpush.msra.mxu0 %v861
        %918 = vmatpush.msra.mxu0 %v859
        %919 = vmatpush.msra.mxu0 %v857
        %920 = vmatmul.f32.gmra.mxu0 %v882
        %v921 = vpop.f32.mrf.mxu0
        %v922 = vadd.f32 %v879, %v921
        %923 = vdwg.mxu0
        %v924 = vadd.f32 %v902, %v584
        %v925 = vadd.f32 %v922, %v585
        %v926 = vmax.f32 %v924, 0.0
        %v927 = vmax.f32 %v925, 0.0
        %928 = vst [vmem:[%s225] sm:$0xff] %v926
        %929 = vst [vmem:[%s225 + $0x8] sm:$0xff] %v927
        %s930 = sand.u32 %s117, 1
        %s931 = scalar_lea.sflag [#allocation5], %s930
        %s932 = sand.u32 %s117, 1
        %s933 = smul.addr %s932, 16
        %s934 = scalar_lea.vmem [#allocation8], %s933
        // Predicated region
        $region45: #{tpu_custom_call.1} parent=35 // pred_check
          %p935 = pneg %p127
        $region46: #{tpu_custom_call.1} parent=35 // pred_check_branch
          %937 = sbr.rel (%p935) target = $region48
        $region47: #{tpu_custom_call.1} parent=35 // pred_region
          %s938 = smul.u32 2, %s20
          %940 = vsyncadd %s931, 0
          %s941 = smul.addr %s938, 8
          %s942 = scalar_lea.hbm %s4, %s941
          %s944 = sshll.u32 %s934, 4
          %s945 = int_to_ptr.vmem [resolvable:$true] %s944
          %s946 = sshll.u32 %s942, 4
          %s947 = int_to_ptr.hbm [resolvable:$true] %s946
          %949 = dma.vmem_to_hbm [thread:$0]  %s945, 256, %s947, %s931
        $region48: #{tpu_custom_call.1} parent=35 // pred_fallthru
          _
      $region36: #{tpu_custom_call.1} parent=5 // pred_fallthru
        _
      %p950 = scmp.le.s32.totalorder 2, %s15
      // Predicated region
      $region49: #{tpu_custom_call.1} parent=5 // pred_check
        %p951 = pneg %p950
      $region50: #{tpu_custom_call.1} parent=5 // pred_check_branch
        %953 = sbr.rel (%p951) target = $region52
      $region51: #{tpu_custom_call.1} parent=5 // pred_region
        %s954 = ssub.s32 %s15, 2
        // Predicated region
        $region53: #{tpu_custom_call.1} parent=51 // pred_check
          %p955 = pneg %p133
        $region54: #{tpu_custom_call.1} parent=51 // pred_check_branch
          %957 = sbr.rel (%p955) target = $region56
        $region55: #{tpu_custom_call.1} parent=51 // pred_region
          %s958 = sand.u32 %s118, 1
          %s959 = scalar_lea.sflag [#allocation5], %s958
          %s960 = sand.u32 %s118, 1
          %s961 = smul.addr %s960, 16
          %s962 = scalar_lea.vmem [#allocation8], %s961
          %964 = dma.done %s959, 256
        $region56: #{tpu_custom_call.1} parent=51 // pred_fallthru
          _
      $region52: #{tpu_custom_call.1} parent=5 // pred_fallthru
        _
    $region6: #{tpu_custom_call.1} parent=1 // loop_footer
      %s19 = sadd.s32 1, %s15
    $region7: #{tpu_custom_call.1} parent=1 // loop_footer_branch
      %14 = sbr.rel target = $region3
    $region8: #{tpu_custom_call.1} parent=1 // loop_exit
      _
    %965 = vsyncpa [#allocation4], 1
    %s966 = scalar_lea.sflag [#allocation4], 1
    %967 = vsyncpa %s966, 1
    %968 = vsyncpa [#allocation7], 1
    %969 = vsyncpa [#allocation5], 1
    %s970 = scalar_lea.sflag [#allocation5], 1
    %971 = vsyncpa %s970, 1

</llo_original>
